<compile_context>
chip_gen: v5e
topology: v5e:2x2
jax: 0.10.0
libtpu: 0.0.40
codegen_flags: <defaults>
</compile_context>

<pallas_src>
import jax
import jax.numpy as jnp
import numpy as np
from jax import lax
from jax.experimental import pallas as pl
from jax.experimental.pallas import tpu as pltpu

LAM = 50.0  # ridge regularizer used by R2D2.classifier


# ----------------------------------------------------------------------------
# Encoder kernel: conv-as-GEMM (bf16 -> f32 acc) + ReLU + global average pool.
# One grid step processes t_imgs images; grid axis is parallel over images.
# ----------------------------------------------------------------------------
def encoder_pool_kernel(patches_ref, w_ref, feats_ref):
    # patches_ref: (t_imgs*HW, K_pad) bf16   w_ref: (K_pad, D_pad) bf16
    # feats_ref:   (t_imgs, D_pad)    f32
    t_imgs, _ = feats_ref.shape
    hw = patches_ref.shape[0] // t_imgs

    y = jnp.dot(patches_ref[...], w_ref[...],
                preferred_element_type=jnp.float32)        # (t_imgs*HW, D_pad)
    y = jnp.maximum(y, 0.0)

    # Global average pool: per-image tile-aligned static slice (HW is a
    # multiple of 8) + sublane reduction.  Replaces the old (B, B*HW) masked
    # pool-matmul that spilled the vreg file.
    inv_hw = 1.0 / hw
    for t in range(t_imgs):                                # static unroll
        seg = y[t * hw:(t + 1) * hw, :]                    # (HW, D_pad)
        feats_ref[t:t + 1, :] = jnp.sum(seg, axis=0, keepdims=True) * inv_hw


# ----------------------------------------------------------------------------
# Fused classifier tail: gram + ridge solve (Gauss-Jordan) + logits.
# ----------------------------------------------------------------------------
def ridge_logits_kernel(sup_ref, qry_ref, y_ref, out_ref):
    # sup_ref: (ns_pad, D_pad) f32 (zero-padded support rows)
    # qry_ref: (nq, D_pad)     f32
    # y_ref:   (ns_pad, n_way) f32 (zero-padded rows)
    # out_ref: (nq, n_way)     f32
    sup = sup_ref[...]
    ns = sup.shape[0]

    rows = lax.broadcasted_iota(jnp.int32, (ns, ns), 0)
    cols = lax.broadcasted_iota(jnp.int32, (ns, ns), 1)
    a = lax.dot_general(sup, sup, (((1,), (1,)), ((), ())),
                        preferred_element_type=jnp.float32)      # S @ S^T
    a = a + LAM * (rows == cols).astype(jnp.float32)

    t = y_ref[...]                                               # (ns, n_way)
    row_ids_t = lax.broadcasted_iota(jnp.int32, t.shape, 0)
    col_ids_1 = lax.broadcasted_iota(jnp.int32, (ns, 1), 0)

    # Gauss-Jordan solve of A t = Y (unrolled; A is SPD + LAM*I so the pivots
    # are well away from zero and no pivoting is needed).  Replaces the old
    # explicit inverse (solve(A, I)) + extra matmul + extra pallas_call.
    for k in range(ns):                                          # static unroll
        piv = a[k:k + 1, k:k + 1]                                # (1, 1)
        inv_piv = 1.0 / piv
        a_row = a[k:k + 1, :] * inv_piv                          # (1, ns)
        t_row = t[k:k + 1, :] * inv_piv                          # (1, n_way)
        col = jnp.where(col_ids_1 == k, 0.0, a[:, k:k + 1])      # (ns, 1)
        a = jnp.where(rows == k, a_row, a - col * a_row)
        t = jnp.where(row_ids_t == k, t_row, t - col * t_row)

    # w[d, c] = sum_s support[s, d] * t[s, c]  (contract axis 0, no .T copy)
    w = lax.dot_general(sup, t, (((0,), (0,)), ((), ())),
                        preferred_element_type=jnp.float32)      # (D_pad, n_way)
    out_ref[...] = jnp.dot(qry_ref[...], w,
                           preferred_element_type=jnp.float32)


# ----------------------------------------------------------------------------
# Host-side glue
# ----------------------------------------------------------------------------
def _round_up(v, m):
    return ((v + m - 1) // m) * m


def _im2col(imgs_nchw, k_pad):
    """imgs: (N, C, H, W) -> flattened 3x3 patches (N*H*W, k_pad), pad=1."""
    N, C, H, W = imgs_nchw.shape
    K = C * 9
    xp = jnp.pad(imgs_nchw, ((0, 0), (0, 0), (1, 1), (1, 1)))
    windows = [xp[:, :, di:di + H, dj:dj + W]
               for di in range(3) for dj in range(3)]            # each (N,C,H,W)
    patches = jnp.stack(windows, axis=2)                         # (N, C, 9, H, W)
    patches = patches.transpose(0, 3, 4, 1, 2).reshape(N * H * W, K)
    return jnp.pad(patches, ((0, 0), (0, k_pad - K)))


def encode_images(imgs_nchw, conv_w):
    """Conv3x3(pad=1) + ReLU + global-avg-pool.  Returns feats (N, D_pad) f32
    with zero-padded feature columns (numerically transparent downstream)."""
    N, C, H, W = imgs_nchw.shape
    D = conv_w.shape[0]
    K = C * 9
    K_pad = _round_up(K, 8)                                      # 27 -> 32
    D_pad = _round_up(D, 128)                                    # 32 -> 128
    HW = H * W

    patches = _im2col(imgs_nchw, K_pad).astype(jnp.bfloat16)     # (N*HW, K_pad)
    w2d = conv_w.reshape(D, K).T.astype(jnp.float32)
    w2d = jnp.pad(w2d, ((0, K_pad - K), (0, D_pad - D))).astype(jnp.bfloat16)

    # Tile the grid over images so the patch DMA pipelines against the MXU and
    # v7x can shard image tiles across its 2 TensorCores.  t_imgs=8 keeps the
    # feats output block (8, 128)-aligned.  Per-step VMEM (toy shapes):
    #   patches 2*(8*256*32)*2B = 256 KiB, y (2048,128)*4B = 1 MiB, weights
    #   resident 8 KiB -> far under every generation's VMEM limit (incl. v7x).
    # TODO(synk): for 84x84 images re-derive t_imgs (2-4 images) vs 64 MiB VMEM.
    t_imgs = 8 if (N % 8 == 0) else N
    grid = (N // t_imgs,)

    feats = pl.pallas_call(
        encoder_pool_kernel,
        out_shape=jax.ShapeDtypeStruct((N, D_pad), jnp.float32),
        grid_spec=pltpu.PrefetchScalarGridSpec(
            num_scalar_prefetch=0,
            grid=grid,
            in_specs=[pl.BlockSpec((t_imgs * HW, K_pad), lambda i: (i, 0)),
                      pl.BlockSpec((K_pad, D_pad), lambda i: (0, 0))],
            out_specs=pl.BlockSpec((t_imgs, D_pad), lambda i: (i, 0)),
        ),
        compiler_params=pltpu.CompilerParams(
            dimension_semantics=("parallel",)),
    )(patches, w2d)
    return feats


def classifier_logits(support, query, y_onehot):
    """support (ns_pad, D_pad), query (nq, D_pad), y_onehot (ns_pad, n_way)."""
    ns_pad, D_pad = support.shape
    nq = query.shape[0]
    n_way = y_onehot.shape[1]
    return pl.pallas_call(
        ridge_logits_kernel,
        out_shape=jax.ShapeDtypeStruct((nq, n_way), jnp.float32),
        grid_spec=pltpu.PrefetchScalarGridSpec(
            num_scalar_prefetch=0,
            grid=(1,),
            in_specs=[pl.BlockSpec((ns_pad, D_pad), lambda i: (0, 0)),
                      pl.BlockSpec((nq, D_pad), lambda i: (0, 0)),
                      pl.BlockSpec((ns_pad, n_way), lambda i: (0, 0))],
            out_specs=pl.BlockSpec((nq, n_way), lambda i: (0, 0)),
        ),
        compiler_params=pltpu.CompilerParams(
            dimension_semantics=("arbitrary",)),
    )(support, query, y_onehot)


def r2d2_forward(x, conv_w, n_way, n_support):
    """x: (n_way, n_support + n_query, C, H, W) -> logits (n_way*n_query, n_way)."""
    n_total = x.shape[1]
    n_query = n_total - n_support
    C, H, W = x.shape[2:]

    # Reorder to [all support (way-major), all query (way-major)] so support /
    # query rows of the feature slab are contiguous static slices.  Matches the
    # original z.reshape(n_way, -1, d)[:, :n_support] / [:, n_support:] split.
    x_sup = x[:, :n_support].reshape(-1, C, H, W)
    x_qry = x[:, n_support:].reshape(-1, C, H, W)
    imgs = jnp.concatenate([x_sup, x_qry], axis=0).astype(jnp.float32)

    ns = n_way * n_support
    nq = n_way * n_query

    feats = encode_images(imgs, conv_w)                          # (N, D_pad) f32

    # Pad the support block to a multiple of 8 rows so the gram / solve stay
    # sublane-aligned.  Padded support rows & Y rows are zero; the padded block
    # of A is LAM*I, so the padded rows of the solution are exactly zero and
    # logits are unchanged.
    ns_pad = _round_up(ns, 8)
    support = jnp.pad(feats[:ns], ((0, ns_pad - ns), (0, 0)))
    query = feats[ns:]

    labels = jnp.repeat(jnp.arange(n_way), n_support)
    y_onehot = jax.nn.one_hot(labels, n_way, dtype=jnp.float32)  # (ns, n_way)
    y_onehot = jnp.pad(y_onehot, ((0, ns_pad - ns), (0, 0)))

    return classifier_logits(support, query, y_onehot)


# ----------------------------------------------------------------------------
# Pure-JAX reference (for correctness sanity-check, f32 end-to-end)
# ----------------------------------------------------------------------------
def reference_forward(x, conv_w, n_way, n_support):
    C, H, W = x.shape[2:]
    imgs = x.reshape(-1, C, H, W).astype(jnp.float32)
    y = lax.conv_general_dilated(imgs, conv_w.astype(jnp.float32),
                                 window_strides=(1, 1), padding="SAME",
                                 dimension_numbers=("NCHW", "OIHW", "NCHW"))
    y = jnp.maximum(y, 0.0)
    z = jnp.mean(y, axis=(2, 3))                                 # (N, D)
    d = z.shape[1]
    z = z.reshape(n_way, -1, d)
    support = z[:, :n_support].reshape(-1, d)
    query = z[:, n_support:].reshape(-1, d)
    ns = support.shape[0]
    y_onehot = jax.nn.one_hot(jnp.repeat(jnp.arange(n_way), n_support),
                              n_way, dtype=jnp.float32)
    a = support @ support.T + LAM * jnp.eye(ns, dtype=jnp.float32)
    t = jnp.linalg.solve(a, y_onehot)
    return query @ (support.T @ t)


if __name__ == "__main__":
    n_way, n_support, n_query = 4, 2, 2
    C, H, W = 3, 16, 16
    D = 32  # encoder feature dim (conv output channels)

    key = jax.random.PRNGKey(0)
    kx, kw = jax.random.split(key)
    x = jax.random.normal(kx, (n_way, n_support + n_query, C, H, W),
                          dtype=jnp.float32)
    conv_w = jax.random.normal(kw, (D, C, 3, 3), dtype=jnp.float32) * 0.1

    logits = jax.block_until_ready(r2d2_forward(x, conv_w, n_way, n_support))
    ref = jax.block_until_ready(reference_forward(x, conv_w, n_way, n_support))

    assert logits.shape == (n_way * n_query, n_way)
    # bf16 patches/weights (f32 accumulation) -> slightly looser tolerance.
    np.testing.assert_allclose(np.asarray(logits), np.asarray(ref),
                               rtol=2e-2, atol=2e-2)
    print("KERNEL_OK")
</pallas_src>

<mosaic_0001>
module attributes {stable_mosaic.version = 11 : i64} {
  func.func @encoder_pool_kernel(%arg0: i32, %arg1: memref<2048x32xbf16, #tpu.memory_space<vmem>>, %arg2: memref<32x128xbf16, #tpu.memory_space<vmem>>, %arg3: memref<8x128xf32, #tpu.memory_space<vmem>>) attributes {dimension_semantics = [#tpu.dimension_semantics<parallel>], iteration_bounds = array<i64: 2>, scalar_prefetch = 0 : i64, scratch_operands = 0 : i64, tpu.core_type = #tpu.core_type<tc>, window_params = [{transform_indices = @transform_0, window_bounds = array<i64: 2048, 32>}, {pipeline_mode = #tpu.pipeline_mode<synchronous>, transform_indices = @transform_1, window_bounds = array<i64: 32, 128>}, {transform_indices = @transform_2, window_bounds = array<i64: 8, 128>}]} {
    %c0 = arith.constant 0 : index
    %c0_0 = arith.constant 0 : index
    %0 = vector.load %arg1[%c0, %c0_0] : memref<2048x32xbf16, #tpu.memory_space<vmem>>, vector<2048x32xbf16>
    %c0_1 = arith.constant 0 : index
    %c0_2 = arith.constant 0 : index
    %1 = vector.load %arg2[%c0_1, %c0_2] : memref<32x128xbf16, #tpu.memory_space<vmem>>, vector<32x128xbf16>
    %cst = arith.constant dense<0.000000e+00> : vector<2048x128xf32>
    %2 = tpu.matmul %0, %1, %cst {dimension_numbers = #tpu.dot_dimension_numbers<[1], [0], [0], [1], [0, 0, 1, 1], [], []>} : vector<2048x32xbf16>, vector<32x128xbf16>, vector<2048x128xf32> -> vector<2048x128xf32>
    %cst_3 = arith.constant 0.000000e+00 : f32
    %3 = vector.broadcast %cst_3 : f32 to vector<2048x128xf32>
    %4 = arith.maximumf %2, %3 : vector<2048x128xf32>
    %5 = vector.extract_strided_slice %4 {offsets = [0, 0], sizes = [256, 128], strides = [1, 1]} : vector<2048x128xf32> to vector<256x128xf32>
    %cst_4 = arith.constant dense<0.000000e+00> : vector<128xf32>
    %6 = vector.multi_reduction <add>, %5, %cst_4 [0] : vector<256x128xf32> to vector<128xf32>
    %7 = vector.shape_cast %6 : vector<128xf32> to vector<1x128xf32>
    %cst_5 = arith.constant 3.906250e-03 : f32
    %8 = vector.broadcast %cst_5 : f32 to vector<1x128xf32>
    %9 = arith.mulf %7, %8 : vector<1x128xf32>
    %c0_6 = arith.constant 0 : index
    %c0_7 = arith.constant 0 : index
    %10 = vector.load %arg3[%c0_6, %c0_7] : memref<8x128xf32, #tpu.memory_space<vmem>>, vector<1x128xf32>
    tpu.vector_store %arg3[%c0_6, %c0_7], %9 {strides = array<i32>} : memref<8x128xf32, #tpu.memory_space<vmem>>, vector<1x128xf32>,
    %11 = vector.extract_strided_slice %4 {offsets = [256, 0], sizes = [256, 128], strides = [1, 1]} : vector<2048x128xf32> to vector<256x128xf32>
    %cst_8 = arith.constant dense<0.000000e+00> : vector<128xf32>
    %12 = vector.multi_reduction <add>, %11, %cst_8 [0] : vector<256x128xf32> to vector<128xf32>
    %13 = vector.shape_cast %12 : vector<128xf32> to vector<1x128xf32>
    %cst_9 = arith.constant 3.906250e-03 : f32
    %14 = vector.broadcast %cst_9 : f32 to vector<1x128xf32>
    %15 = arith.mulf %13, %14 : vector<1x128xf32>
    %c1 = arith.constant 1 : index
    %c0_10 = arith.constant 0 : index
    %16 = vector.load %arg3[%c1, %c0_10] : memref<8x128xf32, #tpu.memory_space<vmem>>, vector<1x128xf32>
    tpu.vector_store %arg3[%c1, %c0_10], %15 {strides = array<i32>} : memref<8x128xf32, #tpu.memory_space<vmem>>, vector<1x128xf32>,
    %17 = vector.extract_strided_slice %4 {offsets = [512, 0], sizes = [256, 128], strides = [1, 1]} : vector<2048x128xf32> to vector<256x128xf32>
    %cst_11 = arith.constant dense<0.000000e+00> : vector<128xf32>
    %18 = vector.multi_reduction <add>, %17, %cst_11 [0] : vector<256x128xf32> to vector<128xf32>
    %19 = vector.shape_cast %18 : vector<128xf32> to vector<1x128xf32>
    %cst_12 = arith.constant 3.906250e-03 : f32
    %20 = vector.broadcast %cst_12 : f32 to vector<1x128xf32>
    %21 = arith.mulf %19, %20 : vector<1x128xf32>
    %c2 = arith.constant 2 : index
    %c0_13 = arith.constant 0 : index
    %22 = vector.load %arg3[%c2, %c0_13] : memref<8x128xf32, #tpu.memory_space<vmem>>, vector<1x128xf32>
    tpu.vector_store %arg3[%c2, %c0_13], %21 {strides = array<i32>} : memref<8x128xf32, #tpu.memory_space<vmem>>, vector<1x128xf32>,
    %23 = vector.extract_strided_slice %4 {offsets = [768, 0], sizes = [256, 128], strides = [1, 1]} : vector<2048x128xf32> to vector<256x128xf32>
    %cst_14 = arith.constant dense<0.000000e+00> : vector<128xf32>
    %24 = vector.multi_reduction <add>, %23, %cst_14 [0] : vector<256x128xf32> to vector<128xf32>
    %25 = vector.shape_cast %24 : vector<128xf32> to vector<1x128xf32>
    %cst_15 = arith.constant 3.906250e-03 : f32
    %26 = vector.broadcast %cst_15 : f32 to vector<1x128xf32>
    %27 = arith.mulf %25, %26 : vector<1x128xf32>
    %c3 = arith.constant 3 : index
    %c0_16 = arith.constant 0 : index
    %28 = vector.load %arg3[%c3, %c0_16] : memref<8x128xf32, #tpu.memory_space<vmem>>, vector<1x128xf32>
    tpu.vector_store %arg3[%c3, %c0_16], %27 {strides = array<i32>} : memref<8x128xf32, #tpu.memory_space<vmem>>, vector<1x128xf32>,
    %29 = vector.extract_strided_slice %4 {offsets = [1024, 0], sizes = [256, 128], strides = [1, 1]} : vector<2048x128xf32> to vector<256x128xf32>
    %cst_17 = arith.constant dense<0.000000e+00> : vector<128xf32>
    %30 = vector.multi_reduction <add>, %29, %cst_17 [0] : vector<256x128xf32> to vector<128xf32>
    %31 = vector.shape_cast %30 : vector<128xf32> to vector<1x128xf32>
    %cst_18 = arith.constant 3.906250e-03 : f32
    %32 = vector.broadcast %cst_18 : f32 to vector<1x128xf32>
    %33 = arith.mulf %31, %32 : vector<1x128xf32>
    %c4 = arith.constant 4 : index
    %c0_19 = arith.constant 0 : index
    %34 = vector.load %arg3[%c4, %c0_19] : memref<8x128xf32, #tpu.memory_space<vmem>>, vector<1x128xf32>
    tpu.vector_store %arg3[%c4, %c0_19], %33 {strides = array<i32>} : memref<8x128xf32, #tpu.memory_space<vmem>>, vector<1x128xf32>,
    %35 = vector.extract_strided_slice %4 {offsets = [1280, 0], sizes = [256, 128], strides = [1, 1]} : vector<2048x128xf32> to vector<256x128xf32>
    %cst_20 = arith.constant dense<0.000000e+00> : vector<128xf32>
    %36 = vector.multi_reduction <add>, %35, %cst_20 [0] : vector<256x128xf32> to vector<128xf32>
    %37 = vector.shape_cast %36 : vector<128xf32> to vector<1x128xf32>
    %cst_21 = arith.constant 3.906250e-03 : f32
    %38 = vector.broadcast %cst_21 : f32 to vector<1x128xf32>
    %39 = arith.mulf %37, %38 : vector<1x128xf32>
    %c5 = arith.constant 5 : index
    %c0_22 = arith.constant 0 : index
    %40 = vector.load %arg3[%c5, %c0_22] : memref<8x128xf32, #tpu.memory_space<vmem>>, vector<1x128xf32>
    tpu.vector_store %arg3[%c5, %c0_22], %39 {strides = array<i32>} : memref<8x128xf32, #tpu.memory_space<vmem>>, vector<1x128xf32>,
    %41 = vector.extract_strided_slice %4 {offsets = [1536, 0], sizes = [256, 128], strides = [1, 1]} : vector<2048x128xf32> to vector<256x128xf32>
    %cst_23 = arith.constant dense<0.000000e+00> : vector<128xf32>
    %42 = vector.multi_reduction <add>, %41, %cst_23 [0] : vector<256x128xf32> to vector<128xf32>
    %43 = vector.shape_cast %42 : vector<128xf32> to vector<1x128xf32>
    %cst_24 = arith.constant 3.906250e-03 : f32
    %44 = vector.broadcast %cst_24 : f32 to vector<1x128xf32>
    %45 = arith.mulf %43, %44 : vector<1x128xf32>
    %c6 = arith.constant 6 : index
    %c0_25 = arith.constant 0 : index
    %46 = vector.load %arg3[%c6, %c0_25] : memref<8x128xf32, #tpu.memory_space<vmem>>, vector<1x128xf32>
    tpu.vector_store %arg3[%c6, %c0_25], %45 {strides = array<i32>} : memref<8x128xf32, #tpu.memory_space<vmem>>, vector<1x128xf32>,
    %47 = vector.extract_strided_slice %4 {offsets = [1792, 0], sizes = [256, 128], strides = [1, 1]} : vector<2048x128xf32> to vector<256x128xf32>
    %cst_26 = arith.constant dense<0.000000e+00> : vector<128xf32>
    %48 = vector.multi_reduction <add>, %47, %cst_26 [0] : vector<256x128xf32> to vector<128xf32>
    %49 = vector.shape_cast %48 : vector<128xf32> to vector<1x128xf32>
    %cst_27 = arith.constant 3.906250e-03 : f32
    %50 = vector.broadcast %cst_27 : f32 to vector<1x128xf32>
    %51 = arith.mulf %49, %50 : vector<1x128xf32>
    %c7 = arith.constant 7 : index
    %c0_28 = arith.constant 0 : index
    %52 = vector.load %arg3[%c7, %c0_28] : memref<8x128xf32, #tpu.memory_space<vmem>>, vector<1x128xf32>
    tpu.vector_store %arg3[%c7, %c0_28], %51 {strides = array<i32>} : memref<8x128xf32, #tpu.memory_space<vmem>>, vector<1x128xf32>,
    return
  }
  func.func @transform_0(%arg0: i32) -> (i32, i32) {
    %c0_i32 = arith.constant 0 : i32
    %c0_i32_0 = arith.constant 0 : i32
    return %arg0, %c0_i32 : i32, i32
  }
  func.func @transform_1(%arg0: i32) -> (i32, i32) {
    %c0_i32 = arith.constant 0 : i32
    %c0_i32_0 = arith.constant 0 : i32
    %c0_i32_1 = arith.constant 0 : i32
    return %c0_i32, %c0_i32_0 : i32, i32
  }
  func.func @transform_2(%arg0: i32) -> (i32, i32) {
    %c0_i32 = arith.constant 0 : i32
    %c0_i32_0 = arith.constant 0 : i32
    return %arg0, %c0_i32 : i32, i32
  }
}

</mosaic_0001>

<llo_original>
// kernel: tpu_custom_call.1
$region0: #{tpu_custom_call.1}
  #allocation0 [shape = 'u32[]', space=smem, size = 0x4, offset = 0x4, fixed_abs, tag = 'smem constant byte address 0x4 - core index']
  #allocation1 [shape = 'u32[72,128]{1,0:T(1,128)}', space=vmem, size = 0x9000, scoped, tag = 'internal scratch']
  %s0 = inlined_call_operand.vmem [shape: bf16[4096,32], index: 0, kind: input, shape index: {}]
  %s1 = inlined_call_operand.vmem [shape: bf16[32,128], index: 1, kind: input, shape index: {}]
  %s2 = inlined_call_operand.hbm [shape: f32[16,128], index: 2, kind: output, shape index: {}]
  %s3 = sld [smem:[#allocation0]]
  $region41: #{tpu_custom_call.1} parent=0
    _
  %s5 = ssub.s32 1, %s3
  %s6 = scalar_select 0, %s5, %s3
  $region1: #{tpu_custom_call.1} parent=0
    #allocation2 [shape = 'u8[8192]{0}', space=vmem, size = 0x2000, scoped, tag = 'output window, operand 0']
    #allocation3 [shape = 's32[2]{0}', space=sflag, size = 0x8, scoped, tag = 'scoped memory for tpu_custom_call.1']
    %7 = vsyncpa [#allocation3], 0
    %s8 = scalar_lea.sflag [#allocation3], 1
    %9 = vsyncpa %s8, 0
    loop: start=0, step=1, limit=4
    $region2: #{tpu_custom_call.1} parent=1 // loop_pre_header
      _
    $region3: #{tpu_custom_call.1} parent=1 // loop_header
      %s11 = sphi 0, %s15
      %p12 = scmp.ge.s32.totalorder %s11, 4
      %s21 = sphi 0, %s23
      %s24 = sphi 0, %s21
      %s25 = sphi 0, %s24
      %s41 = sphi 0, %s25
      %s45 = sphi 0, %s45
      %s47 = sphi 0, %s45
      %s48 = sphi 0, %s47
      %s62 = sphi 0, %s48
      %s68 = sphi 0, %s70
      %s71 = sphi 0, %s68
      %s72 = sphi 0, %s71
      %s88 = sphi 0, %s72
    $region4: #{tpu_custom_call.1} parent=1 // loop_header_branch
      %14 = sbr.rel (%p12) target = $region8
    $region5: #{tpu_custom_call.1} parent=1 // loop_body
      %s16 = ssub.s32 %s11, 1
      %s17 = ssub.s32 %s11, 2
      %s18 = sadd.s32 %s11, 1
      %s19 = ssub.s32 %s11, %s18
      %p20 = scmp.eq.s32.totalorder %s19, 0
      %s22 = sadd.s32 %s21, 1
      %s23 = scalar_select %p20, %s21, %s22
      %p26 = pneg %p20
      %p27 = scmp.eq.s32.totalorder %s11, 1
      %p28 = por %p26, %p27
      %p29 = scmp.ne.s32.totalorder %s21, %s24
      %p30 = scmp.eq.s32.totalorder %s11, 0
      %p31 = por %p29, %p30
      %p32 = scmp.ne.s32.totalorder %s21, %s24
      %p33 = scmp.eq.s32.totalorder %s16, 1
      %p34 = por %p32, %p33
      %p35 = scmp.ne.s32.totalorder %s24, %s25
      %p36 = scmp.eq.s32.totalorder %s16, 0
      %p37 = por %p35, %p36
      %p38 = scmp.ne.s32.totalorder %s24, %s25
      %p39 = scmp.eq.s32.totalorder %s17, 1
      %p40 = por %p38, %p39
      %p42 = scmp.ne.s32.totalorder %s25, %s41
      %p43 = scmp.eq.s32.totalorder %s17, 0
      %p44 = por %p42, %p43
      %s46 = sadd.s32 %s45, 1
      %p49 = scmp.eq.s32.totalorder %s11, 1
      %p50 = scmp.ne.s32.totalorder %s45, %s47
      %p51 = scmp.eq.s32.totalorder %s11, 0
      %p52 = por %p50, %p51
      %p53 = scmp.ne.s32.totalorder %s45, %s47
      %p54 = scmp.eq.s32.totalorder %s16, 1
      %p55 = por %p53, %p54
      %p56 = scmp.ne.s32.totalorder %s47, %s48
      %p57 = scmp.eq.s32.totalorder %s16, 0
      %p58 = por %p56, %p57
      %p59 = scmp.ne.s32.totalorder %s47, %s48
      %p60 = scmp.eq.s32.totalorder %s17, 1
      %p61 = por %p59, %p60
      %p63 = scmp.ne.s32.totalorder %s48, %s62
      %p64 = scmp.eq.s32.totalorder %s17, 0
      %p65 = por %p63, %p64
      %s66 = ssub.s32 %s11, %s18
      %p67 = scmp.eq.s32.totalorder %s66, 0
      %s69 = sadd.s32 %s68, 1
      %s70 = scalar_select %p67, %s68, %s69
      %p73 = pneg %p67
      %p74 = scmp.eq.s32.totalorder %s11, 1
      %p75 = por %p73, %p74
      %p76 = scmp.ne.s32.totalorder %s68, %s71
      %p77 = scmp.eq.s32.totalorder %s11, 0
      %p78 = por %p76, %p77
      %p79 = scmp.ne.s32.totalorder %s68, %s71
      %p80 = scmp.eq.s32.totalorder %s16, 1
      %p81 = por %p79, %p80
      %p82 = scmp.ne.s32.totalorder %s71, %s72
      %p83 = scmp.eq.s32.totalorder %s16, 0
      %p84 = por %p82, %p83
      %p85 = scmp.ne.s32.totalorder %s71, %s72
      %p86 = scmp.eq.s32.totalorder %s17, 1
      %p87 = por %p85, %p86
      %p89 = scmp.ne.s32.totalorder %s72, %s88
      %p90 = scmp.eq.s32.totalorder %s17, 0
      %p91 = por %p89, %p90
      %p92 = scmp.le.s32.totalorder 1, %s11
      %p93 = scmp.lt.s32.totalorder %s11, 3
      %p94 = pnand %p92, %p93
      %p95 = pneg %p94
      // Predicated region
      $region9: #{tpu_custom_call.1} parent=5 // pred_check
        _
      $region10: #{tpu_custom_call.1} parent=5 // pred_check_branch
        %97 = sbr.rel (%p94) target = $region12
      $region11: #{tpu_custom_call.1} parent=5 // pred_region
        %s98 = ssub.s32 %s11, 1
        // Predicated region
        $region13: #{tpu_custom_call.1} parent=11 // pred_check
          %p99 = pneg %p58
        $region14: #{tpu_custom_call.1} parent=11 // pred_check_branch
          %101 = sbr.rel (%p99) target = $region16
        $region15: #{tpu_custom_call.1} parent=11 // pred_region
          _
        $region16: #{tpu_custom_call.1} parent=11 // pred_fallthru
          _
      $region12: #{tpu_custom_call.1} parent=5 // pred_fallthru
        _
      %p102 = scmp.lt.s32.totalorder %s11, 2
      // Predicated region
      $region17: #{tpu_custom_call.1} parent=5 // pred_check
        %p103 = pneg %p102
      $region18: #{tpu_custom_call.1} parent=5 // pred_check_branch
        %105 = sbr.rel (%p103) target = $region20
      $region19: #{tpu_custom_call.1} parent=5 // pred_region
        // Predicated region
        $region21: #{tpu_custom_call.1} parent=19 // pred_check
          %p106 = pneg %p31
        $region22: #{tpu_custom_call.1} parent=19 // pred_check_branch
          %108 = sbr.rel (%p106) target = $region24
        $region23: #{tpu_custom_call.1} parent=19 // pred_region
          %s109 = smul.u32 256, %s11
          %p110 = scmp.lt.s32.totalorder %s109, 511
          %s111 = scalar_select %p110, %s109, 511
          %s112 = smul.addr %s111, 4
          %s113 = scalar_lea.vmem %s0, %s112
          %s114 = smul.u32 256, %s11
        $region24: #{tpu_custom_call.1} parent=19 // pred_fallthru
          _
      $region20: #{tpu_custom_call.1} parent=5 // pred_fallthru
        _
      %p115 = scmp.le.s32.totalorder 1, %s11
      %p116 = scmp.lt.s32.totalorder %s11, 3
      %p117 = pnand %p115, %p116
      %p118 = pneg %p117
      // Predicated region
      $region25: #{tpu_custom_call.1} parent=5 // pred_check
        _
      $region26: #{tpu_custom_call.1} parent=5 // pred_check_branch
        %120 = sbr.rel (%p117) target = $region28
      $region27: #{tpu_custom_call.1} parent=5 // pred_region
        %s121 = ssub.s32 %s11, 1
        %s122 = smul.u32 256, %s16
        %p123 = scmp.lt.s32.totalorder %s122, 511
        %s124 = scalar_select %p123, %s122, 511
        %s125 = smul.addr %s124, 4
        %s126 = scalar_lea.vmem %s0, %s125
        %p127 = pneg %p37
        %p128 = pneg %p34
        %p129 = pneg %p58
        %p130 = pneg %p55
        %p131 = pneg %p84
        %p132 = pneg %p81
        %s133 = sand.u32 %s71, 1
        %s134 = scalar_lea.sflag [#allocation3], %s133
        %s135 = sand.u32 %s71, 1
        %s136 = smul.addr %s135, 8
        %s137 = scalar_lea.vmem [#allocation2], %s136
        %s138 = smul.u32 256, %s16
        %p139 = scmp.lt.s32.totalorder %s138, 511
        %s140 = scalar_select %p139, %s138, 511
        %s141 = smul.addr %s140, 4
        %s142 = scalar_lea.vmem %s0, %s141
        %s143 = smul.u32 256, %s16
        %v145 = vld [vmem:[%s142] sm:$0xf]
        %v146 = vld [vmem:[%s142 + $0x4] sm:$0xf]
        %v147 = vld [vmem:[%s142 + $0x8] sm:$0xf]
        %v148 = vld [vmem:[%s142 + $0xc] sm:$0xf]
        %v149 = vld [vmem:[%s142 + $0x10] sm:$0xf]
        %v150 = vld [vmem:[%s142 + $0x14] sm:$0xf]
        %v151 = vld [vmem:[%s142 + $0x18] sm:$0xf]
        %v152 = vld [vmem:[%s142 + $0x1c] sm:$0xf]
        %v153 = vld [vmem:[%s142 + $0x20] sm:$0xf]
        %v154 = vld [vmem:[%s142 + $0x24] sm:$0xf]
        %v155 = vld [vmem:[%s142 + $0x28] sm:$0xf]
        %v156 = vld [vmem:[%s142 + $0x2c] sm:$0xf]
        %v157 = vld [vmem:[%s142 + $0x30] sm:$0xf]
        %v158 = vld [vmem:[%s142 + $0x34] sm:$0xf]
        %v159 = vld [vmem:[%s142 + $0x38] sm:$0xf]
        %v160 = vld [vmem:[%s142 + $0x3c] sm:$0xf]
        %v161 = vld [vmem:[%s142 + $0x40] sm:$0xf]
        %v162 = vld [vmem:[%s142 + $0x44] sm:$0xf]
        %v163 = vld [vmem:[%s142 + $0x48] sm:$0xf]
        %v164 = vld [vmem:[%s142 + $0x4c] sm:$0xf]
        %v165 = vld [vmem:[%s142 + $0x50] sm:$0xf]
        %v166 = vld [vmem:[%s142 + $0x54] sm:$0xf]
        %v167 = vld [vmem:[%s142 + $0x58] sm:$0xf]
        %v168 = vld [vmem:[%s142 + $0x5c] sm:$0xf]
        %v169 = vld [vmem:[%s142 + $0x60] sm:$0xf]
        %v170 = vld [vmem:[%s142 + $0x64] sm:$0xf]
        %v171 = vld [vmem:[%s142 + $0x68] sm:$0xf]
        %v172 = vld [vmem:[%s142 + $0x6c] sm:$0xf]
        %v173 = vld [vmem:[%s142 + $0x70] sm:$0xf]
        %v174 = vld [vmem:[%s142 + $0x74] sm:$0xf]
        %v175 = vld [vmem:[%s142 + $0x78] sm:$0xf]
        %v176 = vld [vmem:[%s142 + $0x7c] sm:$0xf]
        %v177 = vld [vmem:[%s142 + $0x80] sm:$0xf]
        %v178 = vld [vmem:[%s142 + $0x84] sm:$0xf]
        %v179 = vld [vmem:[%s142 + $0x88] sm:$0xf]
        %v180 = vld [vmem:[%s142 + $0x8c] sm:$0xf]
        %v181 = vld [vmem:[%s142 + $0x90] sm:$0xf]
        %v182 = vld [vmem:[%s142 + $0x94] sm:$0xf]
        %v183 = vld [vmem:[%s142 + $0x98] sm:$0xf]
        %v184 = vld [vmem:[%s142 + $0x9c] sm:$0xf]
        %v185 = vld [vmem:[%s142 + $0xa0] sm:$0xf]
        %v186 = vld [vmem:[%s142 + $0xa4] sm:$0xf]
        %v187 = vld [vmem:[%s142 + $0xa8] sm:$0xf]
        %v188 = vld [vmem:[%s142 + $0xac] sm:$0xf]
        %v189 = vld [vmem:[%s142 + $0xb0] sm:$0xf]
        %v190 = vld [vmem:[%s142 + $0xb4] sm:$0xf]
        %v191 = vld [vmem:[%s142 + $0xb8] sm:$0xf]
        %v192 = vld [vmem:[%s142 + $0xbc] sm:$0xf]
        %v193 = vld [vmem:[%s142 + $0xc0] sm:$0xf]
        %v194 = vld [vmem:[%s142 + $0xc4] sm:$0xf]
        %v195 = vld [vmem:[%s142 + $0xc8] sm:$0xf]
        %v196 = vld [vmem:[%s142 + $0xcc] sm:$0xf]
        %v197 = vld [vmem:[%s142 + $0xd0] sm:$0xf]
        %v198 = vld [vmem:[%s142 + $0xd4] sm:$0xf]
        %v199 = vld [vmem:[%s142 + $0xd8] sm:$0xf]
        %v200 = vld [vmem:[%s142 + $0xdc] sm:$0xf]
        %v201 = vld [vmem:[%s142 + $0xe0] sm:$0xf]
        %v202 = vld [vmem:[%s142 + $0xe4] sm:$0xf]
        %v203 = vld [vmem:[%s142 + $0xe8] sm:$0xf]
        %v204 = vld [vmem:[%s142 + $0xec] sm:$0xf]
        %v205 = vld [vmem:[%s142 + $0xf0] sm:$0xf]
        %v206 = vld [vmem:[%s142 + $0xf4] sm:$0xf]
        %v207 = vld [vmem:[%s142 + $0xf8] sm:$0xf]
        %v208 = vld [vmem:[%s142 + $0xfc] sm:$0xf]
        %v209 = vld [vmem:[%s142 + $0x100] sm:$0xf]
        %v210 = vld [vmem:[%s142 + $0x104] sm:$0xf]
        %v211 = vld [vmem:[%s142 + $0x108] sm:$0xf]
        %v212 = vld [vmem:[%s142 + $0x10c] sm:$0xf]
        %v213 = vld [vmem:[%s142 + $0x110] sm:$0xf]
        %v214 = vld [vmem:[%s142 + $0x114] sm:$0xf]
        %v215 = vld [vmem:[%s142 + $0x118] sm:$0xf]
        %v216 = vld [vmem:[%s142 + $0x11c] sm:$0xf]
        %v217 = vld [vmem:[%s142 + $0x120] sm:$0xf]
        %v218 = vld [vmem:[%s142 + $0x124] sm:$0xf]
        %v219 = vld [vmem:[%s142 + $0x128] sm:$0xf]
        %v220 = vld [vmem:[%s142 + $0x12c] sm:$0xf]
        %v221 = vld [vmem:[%s142 + $0x130] sm:$0xf]
        %v222 = vld [vmem:[%s142 + $0x134] sm:$0xf]
        %v223 = vld [vmem:[%s142 + $0x138] sm:$0xf]
        %v224 = vld [vmem:[%s142 + $0x13c] sm:$0xf]
        %v225 = vld [vmem:[%s142 + $0x140] sm:$0xf]
        %v226 = vld [vmem:[%s142 + $0x144] sm:$0xf]
        %v227 = vld [vmem:[%s142 + $0x148] sm:$0xf]
        %v228 = vld [vmem:[%s142 + $0x14c] sm:$0xf]
        %v229 = vld [vmem:[%s142 + $0x150] sm:$0xf]
        %v230 = vld [vmem:[%s142 + $0x154] sm:$0xf]
        %v231 = vld [vmem:[%s142 + $0x158] sm:$0xf]
        %v232 = vld [vmem:[%s142 + $0x15c] sm:$0xf]
        %v233 = vld [vmem:[%s142 + $0x160] sm:$0xf]
        %v234 = vld [vmem:[%s142 + $0x164] sm:$0xf]
        %v235 = vld [vmem:[%s142 + $0x168] sm:$0xf]
        %v236 = vld [vmem:[%s142 + $0x16c] sm:$0xf]
        %v237 = vld [vmem:[%s142 + $0x170] sm:$0xf]
        %v238 = vld [vmem:[%s142 + $0x174] sm:$0xf]
        %v239 = vld [vmem:[%s142 + $0x178] sm:$0xf]
        %v240 = vld [vmem:[%s142 + $0x17c] sm:$0xf]
        %v241 = vld [vmem:[%s142 + $0x180] sm:$0xf]
        %v242 = vld [vmem:[%s142 + $0x184] sm:$0xf]
        %v243 = vld [vmem:[%s142 + $0x188] sm:$0xf]
        %v244 = vld [vmem:[%s142 + $0x18c] sm:$0xf]
        %v245 = vld [vmem:[%s142 + $0x190] sm:$0xf]
        %v246 = vld [vmem:[%s142 + $0x194] sm:$0xf]
        %v247 = vld [vmem:[%s142 + $0x198] sm:$0xf]
        %v248 = vld [vmem:[%s142 + $0x19c] sm:$0xf]
        %v249 = vld [vmem:[%s142 + $0x1a0] sm:$0xf]
        %v250 = vld [vmem:[%s142 + $0x1a4] sm:$0xf]
        %v251 = vld [vmem:[%s142 + $0x1a8] sm:$0xf]
        %v252 = vld [vmem:[%s142 + $0x1ac] sm:$0xf]
        %v253 = vld [vmem:[%s142 + $0x1b0] sm:$0xf]
        %v254 = vld [vmem:[%s142 + $0x1b4] sm:$0xf]
        %v255 = vld [vmem:[%s142 + $0x1b8] sm:$0xf]
        %v256 = vld [vmem:[%s142 + $0x1bc] sm:$0xf]
        %v257 = vld [vmem:[%s142 + $0x1c0] sm:$0xf]
        %v258 = vld [vmem:[%s142 + $0x1c4] sm:$0xf]
        %v259 = vld [vmem:[%s142 + $0x1c8] sm:$0xf]
        %v260 = vld [vmem:[%s142 + $0x1cc] sm:$0xf]
        %v261 = vld [vmem:[%s142 + $0x1d0] sm:$0xf]
        %v262 = vld [vmem:[%s142 + $0x1d4] sm:$0xf]
        %v263 = vld [vmem:[%s142 + $0x1d8] sm:$0xf]
        %v264 = vld [vmem:[%s142 + $0x1dc] sm:$0xf]
        %v265 = vld [vmem:[%s142 + $0x1e0] sm:$0xf]
        %v266 = vld [vmem:[%s142 + $0x1e4] sm:$0xf]
        %v267 = vld [vmem:[%s142 + $0x1e8] sm:$0xf]
        %v268 = vld [vmem:[%s142 + $0x1ec] sm:$0xf]
        %v269 = vld [vmem:[%s142 + $0x1f0] sm:$0xf]
        %v270 = vld [vmem:[%s142 + $0x1f4] sm:$0xf]
        %v271 = vld [vmem:[%s142 + $0x1f8] sm:$0xf]
        %v272 = vld [vmem:[%s142 + $0x1fc] sm:$0xf]
        %v273 = vld [vmem:[%s142 + $0x200] sm:$0xf]
        %v274 = vld [vmem:[%s142 + $0x204] sm:$0xf]
        %v275 = vld [vmem:[%s142 + $0x208] sm:$0xf]
        %v276 = vld [vmem:[%s142 + $0x20c] sm:$0xf]
        %v277 = vld [vmem:[%s142 + $0x210] sm:$0xf]
        %v278 = vld [vmem:[%s142 + $0x214] sm:$0xf]
        %v279 = vld [vmem:[%s142 + $0x218] sm:$0xf]
        %v280 = vld [vmem:[%s142 + $0x21c] sm:$0xf]
        %v281 = vld [vmem:[%s142 + $0x220] sm:$0xf]
        %v282 = vld [vmem:[%s142 + $0x224] sm:$0xf]
        %v283 = vld [vmem:[%s142 + $0x228] sm:$0xf]
        %v284 = vld [vmem:[%s142 + $0x22c] sm:$0xf]
        %v285 = vld [vmem:[%s142 + $0x230] sm:$0xf]
        %v286 = vld [vmem:[%s142 + $0x234] sm:$0xf]
        %v287 = vld [vmem:[%s142 + $0x238] sm:$0xf]
        %v288 = vld [vmem:[%s142 + $0x23c] sm:$0xf]
        %v289 = vld [vmem:[%s142 + $0x240] sm:$0xf]
        %v290 = vld [vmem:[%s142 + $0x244] sm:$0xf]
        %v291 = vld [vmem:[%s142 + $0x248] sm:$0xf]
        %v292 = vld [vmem:[%s142 + $0x24c] sm:$0xf]
        %v293 = vld [vmem:[%s142 + $0x250] sm:$0xf]
        %v294 = vld [vmem:[%s142 + $0x254] sm:$0xf]
        %v295 = vld [vmem:[%s142 + $0x258] sm:$0xf]
        %v296 = vld [vmem:[%s142 + $0x25c] sm:$0xf]
        %v297 = vld [vmem:[%s142 + $0x260] sm:$0xf]
        %v298 = vld [vmem:[%s142 + $0x264] sm:$0xf]
        %v299 = vld [vmem:[%s142 + $0x268] sm:$0xf]
        %v300 = vld [vmem:[%s142 + $0x26c] sm:$0xf]
        %v301 = vld [vmem:[%s142 + $0x270] sm:$0xf]
        %v302 = vld [vmem:[%s142 + $0x274] sm:$0xf]
        %v303 = vld [vmem:[%s142 + $0x278] sm:$0xf]
        %v304 = vld [vmem:[%s142 + $0x27c] sm:$0xf]
        %v305 = vld [vmem:[%s142 + $0x280] sm:$0xf]
        %v306 = vld [vmem:[%s142 + $0x284] sm:$0xf]
        %v307 = vld [vmem:[%s142 + $0x288] sm:$0xf]
        %v308 = vld [vmem:[%s142 + $0x28c] sm:$0xf]
        %v309 = vld [vmem:[%s142 + $0x290] sm:$0xf]
        %v310 = vld [vmem:[%s142 + $0x294] sm:$0xf]
        %v311 = vld [vmem:[%s142 + $0x298] sm:$0xf]
        %v312 = vld [vmem:[%s142 + $0x29c] sm:$0xf]
        %v313 = vld [vmem:[%s142 + $0x2a0] sm:$0xf]
        %v314 = vld [vmem:[%s142 + $0x2a4] sm:$0xf]
        %v315 = vld [vmem:[%s142 + $0x2a8] sm:$0xf]
        %v316 = vld [vmem:[%s142 + $0x2ac] sm:$0xf]
        %v317 = vld [vmem:[%s142 + $0x2b0] sm:$0xf]
        %v318 = vld [vmem:[%s142 + $0x2b4] sm:$0xf]
        %v319 = vld [vmem:[%s142 + $0x2b8] sm:$0xf]
        %v320 = vld [vmem:[%s142 + $0x2bc] sm:$0xf]
        %v321 = vld [vmem:[%s142 + $0x2c0] sm:$0xf]
        %v322 = vld [vmem:[%s142 + $0x2c4] sm:$0xf]
        %v323 = vld [vmem:[%s142 + $0x2c8] sm:$0xf]
        %v324 = vld [vmem:[%s142 + $0x2cc] sm:$0xf]
        %v325 = vld [vmem:[%s142 + $0x2d0] sm:$0xf]
        %v326 = vld [vmem:[%s142 + $0x2d4] sm:$0xf]
        %v327 = vld [vmem:[%s142 + $0x2d8] sm:$0xf]
        %v328 = vld [vmem:[%s142 + $0x2dc] sm:$0xf]
        %v329 = vld [vmem:[%s142 + $0x2e0] sm:$0xf]
        %v330 = vld [vmem:[%s142 + $0x2e4] sm:$0xf]
        %v331 = vld [vmem:[%s142 + $0x2e8] sm:$0xf]
        %v332 = vld [vmem:[%s142 + $0x2ec] sm:$0xf]
        %v333 = vld [vmem:[%s142 + $0x2f0] sm:$0xf]
        %v334 = vld [vmem:[%s142 + $0x2f4] sm:$0xf]
        %v335 = vld [vmem:[%s142 + $0x2f8] sm:$0xf]
        %v336 = vld [vmem:[%s142 + $0x2fc] sm:$0xf]
        %v337 = vld [vmem:[%s142 + $0x300] sm:$0xf]
        %v338 = vld [vmem:[%s142 + $0x304] sm:$0xf]
        %v339 = vld [vmem:[%s142 + $0x308] sm:$0xf]
        %v340 = vld [vmem:[%s142 + $0x30c] sm:$0xf]
        %v341 = vld [vmem:[%s142 + $0x310] sm:$0xf]
        %v342 = vld [vmem:[%s142 + $0x314] sm:$0xf]
        %v343 = vld [vmem:[%s142 + $0x318] sm:$0xf]
        %v344 = vld [vmem:[%s142 + $0x31c] sm:$0xf]
        %v345 = vld [vmem:[%s142 + $0x320] sm:$0xf]
        %v346 = vld [vmem:[%s142 + $0x324] sm:$0xf]
        %v347 = vld [vmem:[%s142 + $0x328] sm:$0xf]
        %v348 = vld [vmem:[%s142 + $0x32c] sm:$0xf]
        %v349 = vld [vmem:[%s142 + $0x330] sm:$0xf]
        %v350 = vld [vmem:[%s142 + $0x334] sm:$0xf]
        %v351 = vld [vmem:[%s142 + $0x338] sm:$0xf]
        %v352 = vld [vmem:[%s142 + $0x33c] sm:$0xf]
        %v353 = vld [vmem:[%s142 + $0x340] sm:$0xf]
        %v354 = vld [vmem:[%s142 + $0x344] sm:$0xf]
        %v355 = vld [vmem:[%s142 + $0x348] sm:$0xf]
        %v356 = vld [vmem:[%s142 + $0x34c] sm:$0xf]
        %v357 = vld [vmem:[%s142 + $0x350] sm:$0xf]
        %v358 = vld [vmem:[%s142 + $0x354] sm:$0xf]
        %v359 = vld [vmem:[%s142 + $0x358] sm:$0xf]
        %v360 = vld [vmem:[%s142 + $0x35c] sm:$0xf]
        %v361 = vld [vmem:[%s142 + $0x360] sm:$0xf]
        %v362 = vld [vmem:[%s142 + $0x364] sm:$0xf]
        %v363 = vld [vmem:[%s142 + $0x368] sm:$0xf]
        %v364 = vld [vmem:[%s142 + $0x36c] sm:$0xf]
        %v365 = vld [vmem:[%s142 + $0x370] sm:$0xf]
        %v366 = vld [vmem:[%s142 + $0x374] sm:$0xf]
        %v367 = vld [vmem:[%s142 + $0x378] sm:$0xf]
        %v368 = vld [vmem:[%s142 + $0x37c] sm:$0xf]
        %v369 = vld [vmem:[%s142 + $0x380] sm:$0xf]
        %v370 = vld [vmem:[%s142 + $0x384] sm:$0xf]
        %v371 = vld [vmem:[%s142 + $0x388] sm:$0xf]
        %v372 = vld [vmem:[%s142 + $0x38c] sm:$0xf]
        %v373 = vld [vmem:[%s142 + $0x390] sm:$0xf]
        %v374 = vld [vmem:[%s142 + $0x394] sm:$0xf]
        %v375 = vld [vmem:[%s142 + $0x398] sm:$0xf]
        %v376 = vld [vmem:[%s142 + $0x39c] sm:$0xf]
        %v377 = vld [vmem:[%s142 + $0x3a0] sm:$0xf]
        %v378 = vld [vmem:[%s142 + $0x3a4] sm:$0xf]
        %v379 = vld [vmem:[%s142 + $0x3a8] sm:$0xf]
        %v380 = vld [vmem:[%s142 + $0x3ac] sm:$0xf]
        %v381 = vld [vmem:[%s142 + $0x3b0] sm:$0xf]
        %v382 = vld [vmem:[%s142 + $0x3b4] sm:$0xf]
        %v383 = vld [vmem:[%s142 + $0x3b8] sm:$0xf]
        %v384 = vld [vmem:[%s142 + $0x3bc] sm:$0xf]
        %v385 = vld [vmem:[%s142 + $0x3c0] sm:$0xf]
        %v386 = vld [vmem:[%s142 + $0x3c4] sm:$0xf]
        %v387 = vld [vmem:[%s142 + $0x3c8] sm:$0xf]
        %v388 = vld [vmem:[%s142 + $0x3cc] sm:$0xf]
        %v389 = vld [vmem:[%s142 + $0x3d0] sm:$0xf]
        %v390 = vld [vmem:[%s142 + $0x3d4] sm:$0xf]
        %v391 = vld [vmem:[%s142 + $0x3d8] sm:$0xf]
        %v392 = vld [vmem:[%s142 + $0x3dc] sm:$0xf]
        %v393 = vld [vmem:[%s142 + $0x3e0] sm:$0xf]
        %v394 = vld [vmem:[%s142 + $0x3e4] sm:$0xf]
        %v395 = vld [vmem:[%s142 + $0x3e8] sm:$0xf]
        %v396 = vld [vmem:[%s142 + $0x3ec] sm:$0xf]
        %v397 = vld [vmem:[%s142 + $0x3f0] sm:$0xf]
        %v398 = vld [vmem:[%s142 + $0x3f4] sm:$0xf]
        %v399 = vld [vmem:[%s142 + $0x3f8] sm:$0xf]
        %v400 = vld [vmem:[%s142 + $0x3fc] sm:$0xf]
        %v401 = vld [vmem:[%s1] sm:$0xf]
        %v402 = vld [vmem:[%s1 + $0x4] sm:$0xf]
        %v403 = vld [vmem:[%s1 + $0x8] sm:$0xf]
        %v404 = vld [vmem:[%s1 + $0xc] sm:$0xf]
        %v661 = vunpack.c.l.b16 %v145
        %v662 = vunpack.c.l.b16 %v146
        %v663 = vunpack.c.l.b16 %v147
        %v664 = vunpack.c.l.b16 %v148
        %v665 = vunpack.c.l.b16 %v149
        %v666 = vunpack.c.l.b16 %v150
        %v667 = vunpack.c.l.b16 %v151
        %v668 = vunpack.c.l.b16 %v152
        %v669 = vunpack.c.l.b16 %v153
        %v670 = vunpack.c.l.b16 %v154
        %v671 = vunpack.c.l.b16 %v155
        %v672 = vunpack.c.l.b16 %v156
        %v673 = vunpack.c.l.b16 %v157
        %v674 = vunpack.c.l.b16 %v158
        %v675 = vunpack.c.l.b16 %v159
        %v676 = vunpack.c.l.b16 %v160
        %v677 = vunpack.c.l.b16 %v161
        %v678 = vunpack.c.l.b16 %v162
        %v679 = vunpack.c.l.b16 %v163
        %v680 = vunpack.c.l.b16 %v164
        %v681 = vunpack.c.l.b16 %v165
        %v682 = vunpack.c.l.b16 %v166
        %v683 = vunpack.c.l.b16 %v167
        %v684 = vunpack.c.l.b16 %v168
        %v685 = vunpack.c.l.b16 %v169
        %v686 = vunpack.c.l.b16 %v170
        %v687 = vunpack.c.l.b16 %v171
        %v688 = vunpack.c.l.b16 %v172
        %v689 = vunpack.c.l.b16 %v173
        %v690 = vunpack.c.l.b16 %v174
        %v691 = vunpack.c.l.b16 %v175
        %v692 = vunpack.c.l.b16 %v176
        %v693 = vunpack.c.l.b16 %v177
        %v694 = vunpack.c.l.b16 %v178
        %v695 = vunpack.c.l.b16 %v179
        %v696 = vunpack.c.l.b16 %v180
        %v697 = vunpack.c.l.b16 %v181
        %v698 = vunpack.c.l.b16 %v182
        %v699 = vunpack.c.l.b16 %v183
        %v700 = vunpack.c.l.b16 %v184
        %v701 = vunpack.c.l.b16 %v185
        %v702 = vunpack.c.l.b16 %v186
        %v703 = vunpack.c.l.b16 %v187
        %v704 = vunpack.c.l.b16 %v188
        %v705 = vunpack.c.l.b16 %v189
        %v706 = vunpack.c.l.b16 %v190
        %v707 = vunpack.c.l.b16 %v191
        %v708 = vunpack.c.l.b16 %v192
        %v709 = vunpack.c.l.b16 %v193
        %v710 = vunpack.c.l.b16 %v194
        %v711 = vunpack.c.l.b16 %v195
        %v712 = vunpack.c.l.b16 %v196
        %v713 = vunpack.c.l.b16 %v197
        %v714 = vunpack.c.l.b16 %v198
        %v715 = vunpack.c.l.b16 %v199
        %v716 = vunpack.c.l.b16 %v200
        %v717 = vunpack.c.l.b16 %v201
        %v718 = vunpack.c.l.b16 %v202
        %v719 = vunpack.c.l.b16 %v203
        %v720 = vunpack.c.l.b16 %v204
        %v721 = vunpack.c.l.b16 %v205
        %v722 = vunpack.c.l.b16 %v206
        %v723 = vunpack.c.l.b16 %v207
        %v724 = vunpack.c.l.b16 %v208
        %v725 = vunpack.c.l.b16 %v209
        %v726 = vunpack.c.l.b16 %v210
        %v727 = vunpack.c.l.b16 %v211
        %v728 = vunpack.c.l.b16 %v212
        %v729 = vunpack.c.l.b16 %v213
        %v730 = vunpack.c.l.b16 %v214
        %v731 = vunpack.c.l.b16 %v215
        %v732 = vunpack.c.l.b16 %v216
        %v733 = vunpack.c.l.b16 %v217
        %v734 = vunpack.c.l.b16 %v218
        %v735 = vunpack.c.l.b16 %v219
        %v736 = vunpack.c.l.b16 %v220
        %v737 = vunpack.c.l.b16 %v221
        %v738 = vunpack.c.l.b16 %v222
        %v739 = vunpack.c.l.b16 %v223
        %v740 = vunpack.c.l.b16 %v224
        %v741 = vunpack.c.l.b16 %v225
        %v742 = vunpack.c.l.b16 %v226
        %v743 = vunpack.c.l.b16 %v227
        %v744 = vunpack.c.l.b16 %v228
        %v745 = vunpack.c.l.b16 %v229
        %v746 = vunpack.c.l.b16 %v230
        %v747 = vunpack.c.l.b16 %v231
        %v748 = vunpack.c.l.b16 %v232
        %v749 = vunpack.c.l.b16 %v233
        %v750 = vunpack.c.l.b16 %v234
        %v751 = vunpack.c.l.b16 %v235
        %v752 = vunpack.c.l.b16 %v236
        %v753 = vunpack.c.l.b16 %v237
        %v754 = vunpack.c.l.b16 %v238
        %v755 = vunpack.c.l.b16 %v239
        %v756 = vunpack.c.l.b16 %v240
        %v757 = vunpack.c.l.b16 %v241
        %v758 = vunpack.c.l.b16 %v242
        %v759 = vunpack.c.l.b16 %v243
        %v760 = vunpack.c.l.b16 %v244
        %v761 = vunpack.c.l.b16 %v245
        %v762 = vunpack.c.l.b16 %v246
        %v763 = vunpack.c.l.b16 %v247
        %v764 = vunpack.c.l.b16 %v248
        %v765 = vunpack.c.l.b16 %v249
        %v766 = vunpack.c.l.b16 %v250
        %v767 = vunpack.c.l.b16 %v251
        %v768 = vunpack.c.l.b16 %v252
        %v769 = vunpack.c.l.b16 %v253
        %v770 = vunpack.c.l.b16 %v254
        %v771 = vunpack.c.l.b16 %v255
        %v772 = vunpack.c.l.b16 %v256
        %v773 = vunpack.c.l.b16 %v257
        %v774 = vunpack.c.l.b16 %v258
        %v775 = vunpack.c.l.b16 %v259
        %v776 = vunpack.c.l.b16 %v260
        %v777 = vunpack.c.l.b16 %v261
        %v778 = vunpack.c.l.b16 %v262
        %v779 = vunpack.c.l.b16 %v263
        %v780 = vunpack.c.l.b16 %v264
        %v781 = vunpack.c.l.b16 %v265
        %v782 = vunpack.c.l.b16 %v266
        %v783 = vunpack.c.l.b16 %v267
        %v784 = vunpack.c.l.b16 %v268
        %v785 = vunpack.c.l.b16 %v269
        %v786 = vunpack.c.l.b16 %v270
        %v787 = vunpack.c.l.b16 %v271
        %v788 = vunpack.c.l.b16 %v272
        %v789 = vunpack.c.l.b16 %v273
        %v790 = vunpack.c.l.b16 %v274
        %v791 = vunpack.c.l.b16 %v275
        %v792 = vunpack.c.l.b16 %v276
        %v793 = vunpack.c.l.b16 %v277
        %v794 = vunpack.c.l.b16 %v278
        %v795 = vunpack.c.l.b16 %v279
        %v796 = vunpack.c.l.b16 %v280
        %v797 = vunpack.c.l.b16 %v281
        %v798 = vunpack.c.l.b16 %v282
        %v799 = vunpack.c.l.b16 %v283
        %v800 = vunpack.c.l.b16 %v284
        %v801 = vunpack.c.l.b16 %v285
        %v802 = vunpack.c.l.b16 %v286
        %v803 = vunpack.c.l.b16 %v287
        %v804 = vunpack.c.l.b16 %v288
        %v805 = vunpack.c.l.b16 %v289
        %v806 = vunpack.c.l.b16 %v290
        %v807 = vunpack.c.l.b16 %v291
        %v808 = vunpack.c.l.b16 %v292
        %v809 = vunpack.c.l.b16 %v293
        %v810 = vunpack.c.l.b16 %v294
        %v811 = vunpack.c.l.b16 %v295
        %v812 = vunpack.c.l.b16 %v296
        %v813 = vunpack.c.l.b16 %v297
        %v814 = vunpack.c.l.b16 %v298
        %v815 = vunpack.c.l.b16 %v299
        %v816 = vunpack.c.l.b16 %v300
        %v817 = vunpack.c.l.b16 %v301
        %v818 = vunpack.c.l.b16 %v302
        %v819 = vunpack.c.l.b16 %v303
        %v820 = vunpack.c.l.b16 %v304
        %v821 = vunpack.c.l.b16 %v305
        %v822 = vunpack.c.l.b16 %v306
        %v823 = vunpack.c.l.b16 %v307
        %v824 = vunpack.c.l.b16 %v308
        %v825 = vunpack.c.l.b16 %v309
        %v826 = vunpack.c.l.b16 %v310
        %v827 = vunpack.c.l.b16 %v311
        %v828 = vunpack.c.l.b16 %v312
        %v829 = vunpack.c.l.b16 %v313
        %v830 = vunpack.c.l.b16 %v314
        %v831 = vunpack.c.l.b16 %v315
        %v832 = vunpack.c.l.b16 %v316
        %v833 = vunpack.c.l.b16 %v317
        %v834 = vunpack.c.l.b16 %v318
        %v835 = vunpack.c.l.b16 %v319
        %v836 = vunpack.c.l.b16 %v320
        %v837 = vunpack.c.l.b16 %v321
        %v838 = vunpack.c.l.b16 %v322
        %v839 = vunpack.c.l.b16 %v323
        %v840 = vunpack.c.l.b16 %v324
        %v841 = vunpack.c.l.b16 %v325
        %v842 = vunpack.c.l.b16 %v326
        %v843 = vunpack.c.l.b16 %v327
        %v844 = vunpack.c.l.b16 %v328
        %v845 = vunpack.c.l.b16 %v329
        %v846 = vunpack.c.l.b16 %v330
        %v847 = vunpack.c.l.b16 %v331
        %v848 = vunpack.c.l.b16 %v332
        %v849 = vunpack.c.l.b16 %v333
        %v850 = vunpack.c.l.b16 %v334
        %v851 = vunpack.c.l.b16 %v335
        %v852 = vunpack.c.l.b16 %v336
        %v853 = vunpack.c.l.b16 %v337
        %v854 = vunpack.c.l.b16 %v338
        %v855 = vunpack.c.l.b16 %v339
        %v856 = vunpack.c.l.b16 %v340
        %v857 = vunpack.c.l.b16 %v341
        %v858 = vunpack.c.l.b16 %v342
        %v859 = vunpack.c.l.b16 %v343
        %v860 = vunpack.c.l.b16 %v344
        %v861 = vunpack.c.l.b16 %v345
        %v862 = vunpack.c.l.b16 %v346
        %v863 = vunpack.c.l.b16 %v347
        %v864 = vunpack.c.l.b16 %v348
        %v865 = vunpack.c.l.b16 %v349
        %v866 = vunpack.c.l.b16 %v350
        %v867 = vunpack.c.l.b16 %v351
        %v868 = vunpack.c.l.b16 %v352
        %v869 = vunpack.c.l.b16 %v353
        %v870 = vunpack.c.l.b16 %v354
        %v871 = vunpack.c.l.b16 %v355
        %v872 = vunpack.c.l.b16 %v356
        %v873 = vunpack.c.l.b16 %v357
        %v874 = vunpack.c.l.b16 %v358
        %v875 = vunpack.c.l.b16 %v359
        %v876 = vunpack.c.l.b16 %v360
        %v877 = vunpack.c.l.b16 %v361
        %v878 = vunpack.c.l.b16 %v362
        %v879 = vunpack.c.l.b16 %v363
        %v880 = vunpack.c.l.b16 %v364
        %v881 = vunpack.c.l.b16 %v365
        %v882 = vunpack.c.l.b16 %v366
        %v883 = vunpack.c.l.b16 %v367
        %v884 = vunpack.c.l.b16 %v368
        %v885 = vunpack.c.l.b16 %v369
        %v886 = vunpack.c.l.b16 %v370
        %v887 = vunpack.c.l.b16 %v371
        %v888 = vunpack.c.l.b16 %v372
        %v889 = vunpack.c.l.b16 %v373
        %v890 = vunpack.c.l.b16 %v374
        %v891 = vunpack.c.l.b16 %v375
        %v892 = vunpack.c.l.b16 %v376
        %v893 = vunpack.c.l.b16 %v377
        %v894 = vunpack.c.l.b16 %v378
        %v895 = vunpack.c.l.b16 %v379
        %v896 = vunpack.c.l.b16 %v380
        %v897 = vunpack.c.l.b16 %v381
        %v898 = vunpack.c.l.b16 %v382
        %v899 = vunpack.c.l.b16 %v383
        %v900 = vunpack.c.l.b16 %v384
        %v901 = vunpack.c.l.b16 %v385
        %v902 = vunpack.c.l.b16 %v386
        %v903 = vunpack.c.l.b16 %v387
        %v904 = vunpack.c.l.b16 %v388
        %v905 = vunpack.c.l.b16 %v389
        %v906 = vunpack.c.l.b16 %v390
        %v907 = vunpack.c.l.b16 %v391
        %v908 = vunpack.c.l.b16 %v392
        %v909 = vunpack.c.l.b16 %v393
        %v910 = vunpack.c.l.b16 %v394
        %v911 = vunpack.c.l.b16 %v395
        %v912 = vunpack.c.l.b16 %v396
        %v913 = vunpack.c.l.b16 %v397
        %v914 = vunpack.c.l.b16 %v398
        %v915 = vunpack.c.l.b16 %v399
        %v916 = vunpack.c.l.b16 %v400
        %v917 = vpack.c.b16 %v662, %v661
        %v918 = vpack.c.b16 %v664, %v663
        %v919 = vpack.c.b16 %v666, %v665
        %v920 = vpack.c.b16 %v668, %v667
        %v921 = vpack.c.b16 %v670, %v669
        %v922 = vpack.c.b16 %v672, %v671
        %v923 = vpack.c.b16 %v674, %v673
        %v924 = vpack.c.b16 %v676, %v675
        %v925 = vpack.c.b16 %v678, %v677
        %v926 = vpack.c.b16 %v680, %v679
        %v927 = vpack.c.b16 %v682, %v681
        %v928 = vpack.c.b16 %v684, %v683
        %v929 = vpack.c.b16 %v686, %v685
        %v930 = vpack.c.b16 %v688, %v687
        %v931 = vpack.c.b16 %v690, %v689
        %v932 = vpack.c.b16 %v692, %v691
        %v933 = vpack.c.b16 %v694, %v693
        %v934 = vpack.c.b16 %v696, %v695
        %v935 = vpack.c.b16 %v698, %v697
        %v936 = vpack.c.b16 %v700, %v699
        %v937 = vpack.c.b16 %v702, %v701
        %v938 = vpack.c.b16 %v704, %v703
        %v939 = vpack.c.b16 %v706, %v705
        %v940 = vpack.c.b16 %v708, %v707
        %v941 = vpack.c.b16 %v710, %v709
        %v942 = vpack.c.b16 %v712, %v711
        %v943 = vpack.c.b16 %v714, %v713
        %v944 = vpack.c.b16 %v716, %v715
        %v945 = vpack.c.b16 %v718, %v717
        %v946 = vpack.c.b16 %v720, %v719
        %v947 = vpack.c.b16 %v722, %v721
        %v948 = vpack.c.b16 %v724, %v723
        %v949 = vpack.c.b16 %v726, %v725
        %v950 = vpack.c.b16 %v728, %v727
        %v951 = vpack.c.b16 %v730, %v729
        %v952 = vpack.c.b16 %v732, %v731
        %v953 = vpack.c.b16 %v734, %v733
        %v954 = vpack.c.b16 %v736, %v735
        %v955 = vpack.c.b16 %v738, %v737
        %v956 = vpack.c.b16 %v740, %v739
        %v957 = vpack.c.b16 %v742, %v741
        %v958 = vpack.c.b16 %v744, %v743
        %v959 = vpack.c.b16 %v746, %v745
        %v960 = vpack.c.b16 %v748, %v747
        %v961 = vpack.c.b16 %v750, %v749
        %v962 = vpack.c.b16 %v752, %v751
        %v963 = vpack.c.b16 %v754, %v753
        %v964 = vpack.c.b16 %v756, %v755
        %v965 = vpack.c.b16 %v758, %v757
        %v966 = vpack.c.b16 %v760, %v759
        %v967 = vpack.c.b16 %v762, %v761
        %v968 = vpack.c.b16 %v764, %v763
        %v969 = vpack.c.b16 %v766, %v765
        %v970 = vpack.c.b16 %v768, %v767
        %v971 = vpack.c.b16 %v770, %v769
        %v972 = vpack.c.b16 %v772, %v771
        %v973 = vpack.c.b16 %v774, %v773
        %v974 = vpack.c.b16 %v776, %v775
        %v975 = vpack.c.b16 %v778, %v777
        %v976 = vpack.c.b16 %v780, %v779
        %v977 = vpack.c.b16 %v782, %v781
        %v978 = vpack.c.b16 %v784, %v783
        %v979 = vpack.c.b16 %v786, %v785
        %v980 = vpack.c.b16 %v788, %v787
        %v981 = vpack.c.b16 %v790, %v789
        %v982 = vpack.c.b16 %v792, %v791
        %v983 = vpack.c.b16 %v794, %v793
        %v984 = vpack.c.b16 %v796, %v795
        %v985 = vpack.c.b16 %v798, %v797
        %v986 = vpack.c.b16 %v800, %v799
        %v987 = vpack.c.b16 %v802, %v801
        %v988 = vpack.c.b16 %v804, %v803
        %v989 = vpack.c.b16 %v806, %v805
        %v990 = vpack.c.b16 %v808, %v807
        %v991 = vpack.c.b16 %v810, %v809
        %v992 = vpack.c.b16 %v812, %v811
        %v993 = vpack.c.b16 %v814, %v813
        %v994 = vpack.c.b16 %v816, %v815
        %v995 = vpack.c.b16 %v818, %v817
        %v996 = vpack.c.b16 %v820, %v819
        %v997 = vpack.c.b16 %v822, %v821
        %v998 = vpack.c.b16 %v824, %v823
        %v999 = vpack.c.b16 %v826, %v825
        %v1000 = vpack.c.b16 %v828, %v827
        %v1001 = vpack.c.b16 %v830, %v829
        %v1002 = vpack.c.b16 %v832, %v831
        %v1003 = vpack.c.b16 %v834, %v833
        %v1004 = vpack.c.b16 %v836, %v835
        %v1005 = vpack.c.b16 %v838, %v837
        %v1006 = vpack.c.b16 %v840, %v839
        %v1007 = vpack.c.b16 %v842, %v841
        %v1008 = vpack.c.b16 %v844, %v843
        %v1009 = vpack.c.b16 %v846, %v845
        %v1010 = vpack.c.b16 %v848, %v847
        %v1011 = vpack.c.b16 %v850, %v849
        %v1012 = vpack.c.b16 %v852, %v851
        %v1013 = vpack.c.b16 %v854, %v853
        %v1014 = vpack.c.b16 %v856, %v855
        %v1015 = vpack.c.b16 %v858, %v857
        %v1016 = vpack.c.b16 %v860, %v859
        %v1017 = vpack.c.b16 %v862, %v861
        %v1018 = vpack.c.b16 %v864, %v863
        %v1019 = vpack.c.b16 %v866, %v865
        %v1020 = vpack.c.b16 %v868, %v867
        %v1021 = vpack.c.b16 %v870, %v869
        %v1022 = vpack.c.b16 %v872, %v871
        %v1023 = vpack.c.b16 %v874, %v873
        %v1024 = vpack.c.b16 %v876, %v875
        %v1025 = vpack.c.b16 %v878, %v877
        %v1026 = vpack.c.b16 %v880, %v879
        %v1027 = vpack.c.b16 %v882, %v881
        %v1028 = vpack.c.b16 %v884, %v883
        %v1029 = vpack.c.b16 %v886, %v885
        %v1030 = vpack.c.b16 %v888, %v887
        %v1031 = vpack.c.b16 %v890, %v889
        %v1032 = vpack.c.b16 %v892, %v891
        %v1033 = vpack.c.b16 %v894, %v893
        %v1034 = vpack.c.b16 %v896, %v895
        %v1035 = vpack.c.b16 %v898, %v897
        %v1036 = vpack.c.b16 %v900, %v899
        %v1037 = vpack.c.b16 %v902, %v901
        %v1038 = vpack.c.b16 %v904, %v903
        %v1039 = vpack.c.b16 %v906, %v905
        %v1040 = vpack.c.b16 %v908, %v907
        %v1041 = vpack.c.b16 %v910, %v909
        %v1042 = vpack.c.b16 %v912, %v911
        %v1043 = vpack.c.b16 %v914, %v913
        %v1044 = vpack.c.b16 %v916, %v915
        %v1049 = vunpack.c.l.b16 %v401
        %v1050 = vunpack.c.l.b16 %v402
        %v1051 = vunpack.c.l.b16 %v403
        %v1052 = vunpack.c.l.b16 %v404
        %v1053 = vpack.c.b16 %v1050, %v1049
        %v1054 = vpack.c.b16 %v1052, %v1051
        %vm1057 = vcmask 261120
        %v1059 = vsel %vm1057, %v917, 0
        %v1062 = vsel %vm1057, %v918, 0
        %v1065 = vsel %vm1057, %v919, 0
        %v1068 = vsel %vm1057, %v920, 0
        %v1071 = vsel %vm1057, %v921, 0
        %v1074 = vsel %vm1057, %v922, 0
        %v1077 = vsel %vm1057, %v923, 0
        %v1080 = vsel %vm1057, %v924, 0
        %v1083 = vsel %vm1057, %v925, 0
        %v1086 = vsel %vm1057, %v926, 0
        %v1089 = vsel %vm1057, %v927, 0
        %v1092 = vsel %vm1057, %v928, 0
        %v1095 = vsel %vm1057, %v929, 0
        %v1098 = vsel %vm1057, %v930, 0
        %v1101 = vsel %vm1057, %v931, 0
        %v1104 = vsel %vm1057, %v932, 0
        %v1107 = vsel %vm1057, %v933, 0
        %v1110 = vsel %vm1057, %v934, 0
        %v1113 = vsel %vm1057, %v935, 0
        %v1116 = vsel %vm1057, %v936, 0
        %v1119 = vsel %vm1057, %v937, 0
        %v1122 = vsel %vm1057, %v938, 0
        %v1125 = vsel %vm1057, %v939, 0
        %v1128 = vsel %vm1057, %v940, 0
        %v1131 = vsel %vm1057, %v941, 0
        %v1134 = vsel %vm1057, %v942, 0
        %v1137 = vsel %vm1057, %v943, 0
        %v1140 = vsel %vm1057, %v944, 0
        %v1143 = vsel %vm1057, %v945, 0
        %v1146 = vsel %vm1057, %v946, 0
        %v1149 = vsel %vm1057, %v947, 0
        %v1152 = vsel %vm1057, %v948, 0
        %v1155 = vsel %vm1057, %v949, 0
        %v1158 = vsel %vm1057, %v950, 0
        %v1161 = vsel %vm1057, %v951, 0
        %v1164 = vsel %vm1057, %v952, 0
        %v1167 = vsel %vm1057, %v953, 0
        %v1170 = vsel %vm1057, %v954, 0
        %v1173 = vsel %vm1057, %v955, 0
        %v1176 = vsel %vm1057, %v956, 0
        %v1179 = vsel %vm1057, %v957, 0
        %v1182 = vsel %vm1057, %v958, 0
        %v1185 = vsel %vm1057, %v959, 0
        %v1188 = vsel %vm1057, %v960, 0
        %v1191 = vsel %vm1057, %v961, 0
        %v1194 = vsel %vm1057, %v962, 0
        %v1197 = vsel %vm1057, %v963, 0
        %v1200 = vsel %vm1057, %v964, 0
        %v1203 = vsel %vm1057, %v965, 0
        %v1206 = vsel %vm1057, %v966, 0
        %v1209 = vsel %vm1057, %v967, 0
        %v1212 = vsel %vm1057, %v968, 0
        %v1215 = vsel %vm1057, %v969, 0
        %v1218 = vsel %vm1057, %v970, 0
        %v1221 = vsel %vm1057, %v971, 0
        %v1224 = vsel %vm1057, %v972, 0
        %v1227 = vsel %vm1057, %v973, 0
        %v1230 = vsel %vm1057, %v974, 0
        %v1233 = vsel %vm1057, %v975, 0
        %v1236 = vsel %vm1057, %v976, 0
        %v1239 = vsel %vm1057, %v977, 0
        %v1242 = vsel %vm1057, %v978, 0
        %v1245 = vsel %vm1057, %v979, 0
        %v1248 = vsel %vm1057, %v980, 0
        %v1251 = vsel %vm1057, %v981, 0
        %v1254 = vsel %vm1057, %v982, 0
        %v1257 = vsel %vm1057, %v983, 0
        %v1260 = vsel %vm1057, %v984, 0
        %v1263 = vsel %vm1057, %v985, 0
        %v1266 = vsel %vm1057, %v986, 0
        %v1269 = vsel %vm1057, %v987, 0
        %v1272 = vsel %vm1057, %v988, 0
        %v1275 = vsel %vm1057, %v989, 0
        %v1278 = vsel %vm1057, %v990, 0
        %v1281 = vsel %vm1057, %v991, 0
        %v1284 = vsel %vm1057, %v992, 0
        %v1287 = vsel %vm1057, %v993, 0
        %v1290 = vsel %vm1057, %v994, 0
        %v1293 = vsel %vm1057, %v995, 0
        %v1296 = vsel %vm1057, %v996, 0
        %v1299 = vsel %vm1057, %v997, 0
        %v1302 = vsel %vm1057, %v998, 0
        %v1305 = vsel %vm1057, %v999, 0
        %v1308 = vsel %vm1057, %v1000, 0
        %v1311 = vsel %vm1057, %v1001, 0
        %v1314 = vsel %vm1057, %v1002, 0
        %v1317 = vsel %vm1057, %v1003, 0
        %v1320 = vsel %vm1057, %v1004, 0
        %v1323 = vsel %vm1057, %v1005, 0
        %v1326 = vsel %vm1057, %v1006, 0
        %v1329 = vsel %vm1057, %v1007, 0
        %v1332 = vsel %vm1057, %v1008, 0
        %v1335 = vsel %vm1057, %v1009, 0
        %v1338 = vsel %vm1057, %v1010, 0
        %v1341 = vsel %vm1057, %v1011, 0
        %v1344 = vsel %vm1057, %v1012, 0
        %v1347 = vsel %vm1057, %v1013, 0
        %v1350 = vsel %vm1057, %v1014, 0
        %v1353 = vsel %vm1057, %v1015, 0
        %v1356 = vsel %vm1057, %v1016, 0
        %v1359 = vsel %vm1057, %v1017, 0
        %v1362 = vsel %vm1057, %v1018, 0
        %v1365 = vsel %vm1057, %v1019, 0
        %v1368 = vsel %vm1057, %v1020, 0
        %v1371 = vsel %vm1057, %v1021, 0
        %v1374 = vsel %vm1057, %v1022, 0
        %v1377 = vsel %vm1057, %v1023, 0
        %v1380 = vsel %vm1057, %v1024, 0
        %v1383 = vsel %vm1057, %v1025, 0
        %v1386 = vsel %vm1057, %v1026, 0
        %v1389 = vsel %vm1057, %v1027, 0
        %v1392 = vsel %vm1057, %v1028, 0
        %v1395 = vsel %vm1057, %v1029, 0
        %v1398 = vsel %vm1057, %v1030, 0
        %v1401 = vsel %vm1057, %v1031, 0
        %v1404 = vsel %vm1057, %v1032, 0
        %v1407 = vsel %vm1057, %v1033, 0
        %v1410 = vsel %vm1057, %v1034, 0
        %v1413 = vsel %vm1057, %v1035, 0
        %v1416 = vsel %vm1057, %v1036, 0
        %v1419 = vsel %vm1057, %v1037, 0
        %v1422 = vsel %vm1057, %v1038, 0
        %v1425 = vsel %vm1057, %v1039, 0
        %v1428 = vsel %vm1057, %v1040, 0
        %v1431 = vsel %vm1057, %v1041, 0
        %v1434 = vsel %vm1057, %v1042, 0
        %v1437 = vsel %vm1057, %v1043, 0
        %v1440 = vsel %vm1057, %v1044, 0
        %1442 = vmatpush.bf16.msra.mxu0 0
        %1443 = vmatpush.bf16.msra.mxu0 0
        %1444 = vmatpush.bf16.msra.mxu0 0
        %1445 = vmatpush.bf16.msra.mxu0 0
        %1446 = vmatpush.bf16.msra.mxu0 0
        %1447 = vmatpush.bf16.msra.mxu0 0
        %1448 = vmatpush.bf16.msra.mxu0 %v1054
        %1449 = vmatpush.bf16.msra.mxu0 %v1053
        %1450 = vmatmul.bf16.gmra.mxu0 %v1059
        %v1451 = vpop.f32.mrf.mxu0
        %v1452 = vadd.f32 0.0, %v1451
        %v1453 = vpop.f32.mrf.mxu0
        %v1454 = vadd.f32 0.0, %v1453
        %1455 = vmatmul.bf16.gmra.mxu0 %v1062
        %v1456 = vpop.f32.mrf.mxu0
        %v1457 = vadd.f32 0.0, %v1456
        %v1458 = vpop.f32.mrf.mxu0
        %v1459 = vadd.f32 0.0, %v1458
        %1460 = vmatmul.bf16.gmra.mxu0 %v1065
        %v1461 = vpop.f32.mrf.mxu0
        %v1462 = vadd.f32 0.0, %v1461
        %v1463 = vpop.f32.mrf.mxu0
        %v1464 = vadd.f32 0.0, %v1463
        %1465 = vmatmul.bf16.gmra.mxu0 %v1068
        %v1466 = vpop.f32.mrf.mxu0
        %v1467 = vadd.f32 0.0, %v1466
        %v1468 = vpop.f32.mrf.mxu0
        %v1469 = vadd.f32 0.0, %v1468
        %1470 = vmatmul.bf16.gmra.mxu0 %v1071
        %v1471 = vpop.f32.mrf.mxu0
        %v1472 = vadd.f32 0.0, %v1471
        %v1473 = vpop.f32.mrf.mxu0
        %v1474 = vadd.f32 0.0, %v1473
        %1475 = vmatmul.bf16.gmra.mxu0 %v1074
        %v1476 = vpop.f32.mrf.mxu0
        %v1477 = vadd.f32 0.0, %v1476
        %v1478 = vpop.f32.mrf.mxu0
        %v1479 = vadd.f32 0.0, %v1478
        %1480 = vmatmul.bf16.gmra.mxu0 %v1077
        %v1481 = vpop.f32.mrf.mxu0
        %v1482 = vadd.f32 0.0, %v1481
        %v1483 = vpop.f32.mrf.mxu0
        %v1484 = vadd.f32 0.0, %v1483
        %1485 = vmatmul.bf16.gmra.mxu0 %v1080
        %v1486 = vpop.f32.mrf.mxu0
        %v1487 = vadd.f32 0.0, %v1486
        %v1488 = vpop.f32.mrf.mxu0
        %v1489 = vadd.f32 0.0, %v1488
        %1490 = vmatmul.bf16.gmra.mxu0 %v1083
        %v1491 = vpop.f32.mrf.mxu0
        %v1492 = vadd.f32 0.0, %v1491
        %v1493 = vpop.f32.mrf.mxu0
        %v1494 = vadd.f32 0.0, %v1493
        %1495 = vmatmul.bf16.gmra.mxu0 %v1086
        %v1496 = vpop.f32.mrf.mxu0
        %v1497 = vadd.f32 0.0, %v1496
        %v1498 = vpop.f32.mrf.mxu0
        %v1499 = vadd.f32 0.0, %v1498
        %1500 = vmatmul.bf16.gmra.mxu0 %v1089
        %v1501 = vpop.f32.mrf.mxu0
        %v1502 = vadd.f32 0.0, %v1501
        %v1503 = vpop.f32.mrf.mxu0
        %v1504 = vadd.f32 0.0, %v1503
        %1505 = vmatmul.bf16.gmra.mxu0 %v1092
        %v1506 = vpop.f32.mrf.mxu0
        %v1507 = vadd.f32 0.0, %v1506
        %v1508 = vpop.f32.mrf.mxu0
        %v1509 = vadd.f32 0.0, %v1508
        %1510 = vmatmul.bf16.gmra.mxu0 %v1095
        %v1511 = vpop.f32.mrf.mxu0
        %v1512 = vadd.f32 0.0, %v1511
        %v1513 = vpop.f32.mrf.mxu0
        %v1514 = vadd.f32 0.0, %v1513
        %1515 = vmatmul.bf16.gmra.mxu0 %v1098
        %v1516 = vpop.f32.mrf.mxu0
        %v1517 = vadd.f32 0.0, %v1516
        %v1518 = vpop.f32.mrf.mxu0
        %v1519 = vadd.f32 0.0, %v1518
        %1520 = vmatmul.bf16.gmra.mxu0 %v1101
        %v1521 = vpop.f32.mrf.mxu0
        %v1522 = vadd.f32 0.0, %v1521
        %v1523 = vpop.f32.mrf.mxu0
        %v1524 = vadd.f32 0.0, %v1523
        %1525 = vmatmul.bf16.gmra.mxu0 %v1104
        %v1526 = vpop.f32.mrf.mxu0
        %v1527 = vadd.f32 0.0, %v1526
        %v1528 = vpop.f32.mrf.mxu0
        %v1529 = vadd.f32 0.0, %v1528
        %1530 = vmatmul.bf16.gmra.mxu0 %v1107
        %v1531 = vpop.f32.mrf.mxu0
        %v1532 = vadd.f32 0.0, %v1531
        %v1533 = vpop.f32.mrf.mxu0
        %v1534 = vadd.f32 0.0, %v1533
        %1535 = vmatmul.bf16.gmra.mxu0 %v1110
        %v1536 = vpop.f32.mrf.mxu0
        %v1537 = vadd.f32 0.0, %v1536
        %v1538 = vpop.f32.mrf.mxu0
        %v1539 = vadd.f32 0.0, %v1538
        %1540 = vmatmul.bf16.gmra.mxu0 %v1113
        %v1541 = vpop.f32.mrf.mxu0
        %v1542 = vadd.f32 0.0, %v1541
        %v1543 = vpop.f32.mrf.mxu0
        %v1544 = vadd.f32 0.0, %v1543
        %1545 = vmatmul.bf16.gmra.mxu0 %v1116
        %v1546 = vpop.f32.mrf.mxu0
        %v1547 = vadd.f32 0.0, %v1546
        %v1548 = vpop.f32.mrf.mxu0
        %v1549 = vadd.f32 0.0, %v1548
        %1550 = vmatmul.bf16.gmra.mxu0 %v1119
        %v1551 = vpop.f32.mrf.mxu0
        %v1552 = vadd.f32 0.0, %v1551
        %v1553 = vpop.f32.mrf.mxu0
        %v1554 = vadd.f32 0.0, %v1553
        %1555 = vmatmul.bf16.gmra.mxu0 %v1122
        %v1556 = vpop.f32.mrf.mxu0
        %v1557 = vadd.f32 0.0, %v1556
        %v1558 = vpop.f32.mrf.mxu0
        %v1559 = vadd.f32 0.0, %v1558
        %1560 = vmatmul.bf16.gmra.mxu0 %v1125
        %v1561 = vpop.f32.mrf.mxu0
        %v1562 = vadd.f32 0.0, %v1561
        %v1563 = vpop.f32.mrf.mxu0
        %v1564 = vadd.f32 0.0, %v1563
        %1565 = vmatmul.bf16.gmra.mxu0 %v1128
        %v1566 = vpop.f32.mrf.mxu0
        %v1567 = vadd.f32 0.0, %v1566
        %v1568 = vpop.f32.mrf.mxu0
        %v1569 = vadd.f32 0.0, %v1568
        %1570 = vmatmul.bf16.gmra.mxu0 %v1131
        %v1571 = vpop.f32.mrf.mxu0
        %v1572 = vadd.f32 0.0, %v1571
        %v1573 = vpop.f32.mrf.mxu0
        %v1574 = vadd.f32 0.0, %v1573
        %1575 = vmatmul.bf16.gmra.mxu0 %v1134
        %v1576 = vpop.f32.mrf.mxu0
        %v1577 = vadd.f32 0.0, %v1576
        %v1578 = vpop.f32.mrf.mxu0
        %v1579 = vadd.f32 0.0, %v1578
        %1580 = vmatmul.bf16.gmra.mxu0 %v1137
        %v1581 = vpop.f32.mrf.mxu0
        %v1582 = vadd.f32 0.0, %v1581
        %v1583 = vpop.f32.mrf.mxu0
        %v1584 = vadd.f32 0.0, %v1583
        %1585 = vmatmul.bf16.gmra.mxu0 %v1140
        %v1586 = vpop.f32.mrf.mxu0
        %v1587 = vadd.f32 0.0, %v1586
        %v1588 = vpop.f32.mrf.mxu0
        %v1589 = vadd.f32 0.0, %v1588
        %1590 = vmatmul.bf16.gmra.mxu0 %v1143
        %v1591 = vpop.f32.mrf.mxu0
        %v1592 = vadd.f32 0.0, %v1591
        %v1593 = vpop.f32.mrf.mxu0
        %v1594 = vadd.f32 0.0, %v1593
        %1595 = vmatmul.bf16.gmra.mxu0 %v1146
        %v1596 = vpop.f32.mrf.mxu0
        %v1597 = vadd.f32 0.0, %v1596
        %v1598 = vpop.f32.mrf.mxu0
        %v1599 = vadd.f32 0.0, %v1598
        %1600 = vmatmul.bf16.gmra.mxu0 %v1149
        %v1601 = vpop.f32.mrf.mxu0
        %v1602 = vadd.f32 0.0, %v1601
        %v1603 = vpop.f32.mrf.mxu0
        %v1604 = vadd.f32 0.0, %v1603
        %1605 = vmatmul.bf16.gmra.mxu0 %v1152
        %v1606 = vpop.f32.mrf.mxu0
        %v1607 = vadd.f32 0.0, %v1606
        %v1608 = vpop.f32.mrf.mxu0
        %v1609 = vadd.f32 0.0, %v1608
        %1610 = vmatmul.bf16.gmra.mxu0 %v1155
        %v1611 = vpop.f32.mrf.mxu0
        %v1612 = vadd.f32 0.0, %v1611
        %v1613 = vpop.f32.mrf.mxu0
        %v1614 = vadd.f32 0.0, %v1613
        %1615 = vmatmul.bf16.gmra.mxu0 %v1158
        %v1616 = vpop.f32.mrf.mxu0
        %v1617 = vadd.f32 0.0, %v1616
        %v1618 = vpop.f32.mrf.mxu0
        %v1619 = vadd.f32 0.0, %v1618
        %1620 = vmatmul.bf16.gmra.mxu0 %v1161
        %v1621 = vpop.f32.mrf.mxu0
        %v1622 = vadd.f32 0.0, %v1621
        %v1623 = vpop.f32.mrf.mxu0
        %v1624 = vadd.f32 0.0, %v1623
        %1625 = vmatmul.bf16.gmra.mxu0 %v1164
        %v1626 = vpop.f32.mrf.mxu0
        %v1627 = vadd.f32 0.0, %v1626
        %v1628 = vpop.f32.mrf.mxu0
        %v1629 = vadd.f32 0.0, %v1628
        %1630 = vmatmul.bf16.gmra.mxu0 %v1167
        %v1631 = vpop.f32.mrf.mxu0
        %v1632 = vadd.f32 0.0, %v1631
        %v1633 = vpop.f32.mrf.mxu0
        %v1634 = vadd.f32 0.0, %v1633
        %1635 = vmatmul.bf16.gmra.mxu0 %v1170
        %v1636 = vpop.f32.mrf.mxu0
        %v1637 = vadd.f32 0.0, %v1636
        %v1638 = vpop.f32.mrf.mxu0
        %v1639 = vadd.f32 0.0, %v1638
        %1640 = vmatmul.bf16.gmra.mxu0 %v1173
        %v1641 = vpop.f32.mrf.mxu0
        %v1642 = vadd.f32 0.0, %v1641
        %v1643 = vpop.f32.mrf.mxu0
        %v1644 = vadd.f32 0.0, %v1643
        %1645 = vmatmul.bf16.gmra.mxu0 %v1176
        %v1646 = vpop.f32.mrf.mxu0
        %v1647 = vadd.f32 0.0, %v1646
        %v1648 = vpop.f32.mrf.mxu0
        %v1649 = vadd.f32 0.0, %v1648
        %1650 = vmatmul.bf16.gmra.mxu0 %v1179
        %v1651 = vpop.f32.mrf.mxu0
        %v1652 = vadd.f32 0.0, %v1651
        %v1653 = vpop.f32.mrf.mxu0
        %v1654 = vadd.f32 0.0, %v1653
        %1655 = vmatmul.bf16.gmra.mxu0 %v1182
        %v1656 = vpop.f32.mrf.mxu0
        %v1657 = vadd.f32 0.0, %v1656
        %v1658 = vpop.f32.mrf.mxu0
        %v1659 = vadd.f32 0.0, %v1658
        %1660 = vmatmul.bf16.gmra.mxu0 %v1185
        %v1661 = vpop.f32.mrf.mxu0
        %v1662 = vadd.f32 0.0, %v1661
        %v1663 = vpop.f32.mrf.mxu0
        %v1664 = vadd.f32 0.0, %v1663
        %1665 = vmatmul.bf16.gmra.mxu0 %v1188
        %v1666 = vpop.f32.mrf.mxu0
        %v1667 = vadd.f32 0.0, %v1666
        %v1668 = vpop.f32.mrf.mxu0
        %v1669 = vadd.f32 0.0, %v1668
        %1670 = vmatmul.bf16.gmra.mxu0 %v1191
        %v1671 = vpop.f32.mrf.mxu0
        %v1672 = vadd.f32 0.0, %v1671
        %v1673 = vpop.f32.mrf.mxu0
        %v1674 = vadd.f32 0.0, %v1673
        %1675 = vmatmul.bf16.gmra.mxu0 %v1194
        %v1676 = vpop.f32.mrf.mxu0
        %v1677 = vadd.f32 0.0, %v1676
        %v1678 = vpop.f32.mrf.mxu0
        %v1679 = vadd.f32 0.0, %v1678
        %1680 = vmatmul.bf16.gmra.mxu0 %v1197
        %v1681 = vpop.f32.mrf.mxu0
        %v1682 = vadd.f32 0.0, %v1681
        %v1683 = vpop.f32.mrf.mxu0
        %v1684 = vadd.f32 0.0, %v1683
        %1685 = vmatmul.bf16.gmra.mxu0 %v1200
        %v1686 = vpop.f32.mrf.mxu0
        %v1687 = vadd.f32 0.0, %v1686
        %v1688 = vpop.f32.mrf.mxu0
        %v1689 = vadd.f32 0.0, %v1688
        %1690 = vmatmul.bf16.gmra.mxu0 %v1203
        %v1691 = vpop.f32.mrf.mxu0
        %v1692 = vadd.f32 0.0, %v1691
        %v1693 = vpop.f32.mrf.mxu0
        %v1694 = vadd.f32 0.0, %v1693
        %1695 = vmatmul.bf16.gmra.mxu0 %v1206
        %v1696 = vpop.f32.mrf.mxu0
        %v1697 = vadd.f32 0.0, %v1696
        %v1698 = vpop.f32.mrf.mxu0
        %v1699 = vadd.f32 0.0, %v1698
        %1700 = vmatmul.bf16.gmra.mxu0 %v1209
        %v1701 = vpop.f32.mrf.mxu0
        %v1702 = vadd.f32 0.0, %v1701
        %v1703 = vpop.f32.mrf.mxu0
        %v1704 = vadd.f32 0.0, %v1703
        %1705 = vmatmul.bf16.gmra.mxu0 %v1212
        %v1706 = vpop.f32.mrf.mxu0
        %v1707 = vadd.f32 0.0, %v1706
        %v1708 = vpop.f32.mrf.mxu0
        %v1709 = vadd.f32 0.0, %v1708
        %1710 = vmatmul.bf16.gmra.mxu0 %v1215
        %v1711 = vpop.f32.mrf.mxu0
        %v1712 = vadd.f32 0.0, %v1711
        %v1713 = vpop.f32.mrf.mxu0
        %v1714 = vadd.f32 0.0, %v1713
        %1715 = vmatmul.bf16.gmra.mxu0 %v1218
        %v1716 = vpop.f32.mrf.mxu0
        %v1717 = vadd.f32 0.0, %v1716
        %v1718 = vpop.f32.mrf.mxu0
        %v1719 = vadd.f32 0.0, %v1718
        %1720 = vmatmul.bf16.gmra.mxu0 %v1221
        %v1721 = vpop.f32.mrf.mxu0
        %v1722 = vadd.f32 0.0, %v1721
        %v1723 = vpop.f32.mrf.mxu0
        %v1724 = vadd.f32 0.0, %v1723
        %1725 = vmatmul.bf16.gmra.mxu0 %v1224
        %v1726 = vpop.f32.mrf.mxu0
        %v1727 = vadd.f32 0.0, %v1726
        %v1728 = vpop.f32.mrf.mxu0
        %v1729 = vadd.f32 0.0, %v1728
        %1730 = vmatmul.bf16.gmra.mxu0 %v1227
        %v1731 = vpop.f32.mrf.mxu0
        %v1732 = vadd.f32 0.0, %v1731
        %v1733 = vpop.f32.mrf.mxu0
        %v1734 = vadd.f32 0.0, %v1733
        %1735 = vmatmul.bf16.gmra.mxu0 %v1230
        %v1736 = vpop.f32.mrf.mxu0
        %v1737 = vadd.f32 0.0, %v1736
        %v1738 = vpop.f32.mrf.mxu0
        %v1739 = vadd.f32 0.0, %v1738
        %1740 = vmatmul.bf16.gmra.mxu0 %v1233
        %v1741 = vpop.f32.mrf.mxu0
        %v1742 = vadd.f32 0.0, %v1741
        %v1743 = vpop.f32.mrf.mxu0
        %v1744 = vadd.f32 0.0, %v1743
        %1745 = vmatmul.bf16.gmra.mxu0 %v1236
        %v1746 = vpop.f32.mrf.mxu0
        %v1747 = vadd.f32 0.0, %v1746
        %v1748 = vpop.f32.mrf.mxu0
        %v1749 = vadd.f32 0.0, %v1748
        %1750 = vmatmul.bf16.gmra.mxu0 %v1239
        %v1751 = vpop.f32.mrf.mxu0
        %v1752 = vadd.f32 0.0, %v1751
        %v1753 = vpop.f32.mrf.mxu0
        %v1754 = vadd.f32 0.0, %v1753
        %1755 = vmatmul.bf16.gmra.mxu0 %v1242
        %v1756 = vpop.f32.mrf.mxu0
        %v1757 = vadd.f32 0.0, %v1756
        %v1758 = vpop.f32.mrf.mxu0
        %v1759 = vadd.f32 0.0, %v1758
        %1760 = vmatmul.bf16.gmra.mxu0 %v1245
        %v1761 = vpop.f32.mrf.mxu0
        %v1762 = vadd.f32 0.0, %v1761
        %v1763 = vpop.f32.mrf.mxu0
        %v1764 = vadd.f32 0.0, %v1763
        %1765 = vmatmul.bf16.gmra.mxu0 %v1248
        %v1766 = vpop.f32.mrf.mxu0
        %v1767 = vadd.f32 0.0, %v1766
        %v1768 = vpop.f32.mrf.mxu0
        %v1769 = vadd.f32 0.0, %v1768
        %1770 = vmatmul.bf16.gmra.mxu0 %v1251
        %v1771 = vpop.f32.mrf.mxu0
        %v1772 = vadd.f32 0.0, %v1771
        %v1773 = vpop.f32.mrf.mxu0
        %v1774 = vadd.f32 0.0, %v1773
        %1775 = vmatmul.bf16.gmra.mxu0 %v1254
        %v1776 = vpop.f32.mrf.mxu0
        %v1777 = vadd.f32 0.0, %v1776
        %v1778 = vpop.f32.mrf.mxu0
        %v1779 = vadd.f32 0.0, %v1778
        %1780 = vmatmul.bf16.gmra.mxu0 %v1257
        %v1781 = vpop.f32.mrf.mxu0
        %v1782 = vadd.f32 0.0, %v1781
        %v1783 = vpop.f32.mrf.mxu0
        %v1784 = vadd.f32 0.0, %v1783
        %1785 = vmatmul.bf16.gmra.mxu0 %v1260
        %v1786 = vpop.f32.mrf.mxu0
        %v1787 = vadd.f32 0.0, %v1786
        %v1788 = vpop.f32.mrf.mxu0
        %v1789 = vadd.f32 0.0, %v1788
        %1790 = vmatmul.bf16.gmra.mxu0 %v1263
        %v1791 = vpop.f32.mrf.mxu0
        %v1792 = vadd.f32 0.0, %v1791
        %v1793 = vpop.f32.mrf.mxu0
        %v1794 = vadd.f32 0.0, %v1793
        %1795 = vmatmul.bf16.gmra.mxu0 %v1266
        %v1796 = vpop.f32.mrf.mxu0
        %v1797 = vadd.f32 0.0, %v1796
        %v1798 = vpop.f32.mrf.mxu0
        %v1799 = vadd.f32 0.0, %v1798
        %1800 = vmatmul.bf16.gmra.mxu0 %v1269
        %v1801 = vpop.f32.mrf.mxu0
        %v1802 = vadd.f32 0.0, %v1801
        %v1803 = vpop.f32.mrf.mxu0
        %v1804 = vadd.f32 0.0, %v1803
        %1805 = vmatmul.bf16.gmra.mxu0 %v1272
        %v1806 = vpop.f32.mrf.mxu0
        %v1807 = vadd.f32 0.0, %v1806
        %v1808 = vpop.f32.mrf.mxu0
        %v1809 = vadd.f32 0.0, %v1808
        %1810 = vmatmul.bf16.gmra.mxu0 %v1275
        %v1811 = vpop.f32.mrf.mxu0
        %v1812 = vadd.f32 0.0, %v1811
        %v1813 = vpop.f32.mrf.mxu0
        %v1814 = vadd.f32 0.0, %v1813
        %1815 = vmatmul.bf16.gmra.mxu0 %v1278
        %v1816 = vpop.f32.mrf.mxu0
        %v1817 = vadd.f32 0.0, %v1816
        %v1818 = vpop.f32.mrf.mxu0
        %v1819 = vadd.f32 0.0, %v1818
        %1820 = vmatmul.bf16.gmra.mxu0 %v1281
        %v1821 = vpop.f32.mrf.mxu0
        %v1822 = vadd.f32 0.0, %v1821
        %v1823 = vpop.f32.mrf.mxu0
        %v1824 = vadd.f32 0.0, %v1823
        %1825 = vmatmul.bf16.gmra.mxu0 %v1284
        %v1826 = vpop.f32.mrf.mxu0
        %v1827 = vadd.f32 0.0, %v1826
        %v1828 = vpop.f32.mrf.mxu0
        %v1829 = vadd.f32 0.0, %v1828
        %1830 = vmatmul.bf16.gmra.mxu0 %v1287
        %v1831 = vpop.f32.mrf.mxu0
        %v1832 = vadd.f32 0.0, %v1831
        %v1833 = vpop.f32.mrf.mxu0
        %v1834 = vadd.f32 0.0, %v1833
        %1835 = vmatmul.bf16.gmra.mxu0 %v1290
        %v1836 = vpop.f32.mrf.mxu0
        %v1837 = vadd.f32 0.0, %v1836
        %v1838 = vpop.f32.mrf.mxu0
        %v1839 = vadd.f32 0.0, %v1838
        %1840 = vmatmul.bf16.gmra.mxu0 %v1293
        %v1841 = vpop.f32.mrf.mxu0
        %v1842 = vadd.f32 0.0, %v1841
        %v1843 = vpop.f32.mrf.mxu0
        %v1844 = vadd.f32 0.0, %v1843
        %1845 = vmatmul.bf16.gmra.mxu0 %v1296
        %v1846 = vpop.f32.mrf.mxu0
        %v1847 = vadd.f32 0.0, %v1846
        %v1848 = vpop.f32.mrf.mxu0
        %v1849 = vadd.f32 0.0, %v1848
        %1850 = vmatmul.bf16.gmra.mxu0 %v1299
        %v1851 = vpop.f32.mrf.mxu0
        %v1852 = vadd.f32 0.0, %v1851
        %v1853 = vpop.f32.mrf.mxu0
        %v1854 = vadd.f32 0.0, %v1853
        %1855 = vmatmul.bf16.gmra.mxu0 %v1302
        %v1856 = vpop.f32.mrf.mxu0
        %v1857 = vadd.f32 0.0, %v1856
        %v1858 = vpop.f32.mrf.mxu0
        %v1859 = vadd.f32 0.0, %v1858
        %1860 = vmatmul.bf16.gmra.mxu0 %v1305
        %v1861 = vpop.f32.mrf.mxu0
        %v1862 = vadd.f32 0.0, %v1861
        %v1863 = vpop.f32.mrf.mxu0
        %v1864 = vadd.f32 0.0, %v1863
        %1865 = vmatmul.bf16.gmra.mxu0 %v1308
        %v1866 = vpop.f32.mrf.mxu0
        %v1867 = vadd.f32 0.0, %v1866
        %v1868 = vpop.f32.mrf.mxu0
        %v1869 = vadd.f32 0.0, %v1868
        %1870 = vmatmul.bf16.gmra.mxu0 %v1311
        %v1871 = vpop.f32.mrf.mxu0
        %v1872 = vadd.f32 0.0, %v1871
        %v1873 = vpop.f32.mrf.mxu0
        %v1874 = vadd.f32 0.0, %v1873
        %1875 = vmatmul.bf16.gmra.mxu0 %v1314
        %v1876 = vpop.f32.mrf.mxu0
        %v1877 = vadd.f32 0.0, %v1876
        %v1878 = vpop.f32.mrf.mxu0
        %v1879 = vadd.f32 0.0, %v1878
        %1880 = vmatmul.bf16.gmra.mxu0 %v1317
        %v1881 = vpop.f32.mrf.mxu0
        %v1882 = vadd.f32 0.0, %v1881
        %v1883 = vpop.f32.mrf.mxu0
        %v1884 = vadd.f32 0.0, %v1883
        %1885 = vmatmul.bf16.gmra.mxu0 %v1320
        %v1886 = vpop.f32.mrf.mxu0
        %v1887 = vadd.f32 0.0, %v1886
        %v1888 = vpop.f32.mrf.mxu0
        %v1889 = vadd.f32 0.0, %v1888
        %1890 = vmatmul.bf16.gmra.mxu0 %v1323
        %v1891 = vpop.f32.mrf.mxu0
        %v1892 = vadd.f32 0.0, %v1891
        %v1893 = vpop.f32.mrf.mxu0
        %v1894 = vadd.f32 0.0, %v1893
        %1895 = vmatmul.bf16.gmra.mxu0 %v1326
        %v1896 = vpop.f32.mrf.mxu0
        %v1897 = vadd.f32 0.0, %v1896
        %v1898 = vpop.f32.mrf.mxu0
        %v1899 = vadd.f32 0.0, %v1898
        %1900 = vmatmul.bf16.gmra.mxu0 %v1329
        %v1901 = vpop.f32.mrf.mxu0
        %v1902 = vadd.f32 0.0, %v1901
        %v1903 = vpop.f32.mrf.mxu0
        %v1904 = vadd.f32 0.0, %v1903
        %1905 = vmatmul.bf16.gmra.mxu0 %v1332
        %v1906 = vpop.f32.mrf.mxu0
        %v1907 = vadd.f32 0.0, %v1906
        %v1908 = vpop.f32.mrf.mxu0
        %v1909 = vadd.f32 0.0, %v1908
        %1910 = vmatmul.bf16.gmra.mxu0 %v1335
        %v1911 = vpop.f32.mrf.mxu0
        %v1912 = vadd.f32 0.0, %v1911
        %v1913 = vpop.f32.mrf.mxu0
        %v1914 = vadd.f32 0.0, %v1913
        %1915 = vmatmul.bf16.gmra.mxu0 %v1338
        %v1916 = vpop.f32.mrf.mxu0
        %v1917 = vadd.f32 0.0, %v1916
        %v1918 = vpop.f32.mrf.mxu0
        %v1919 = vadd.f32 0.0, %v1918
        %1920 = vmatmul.bf16.gmra.mxu0 %v1341
        %v1921 = vpop.f32.mrf.mxu0
        %v1922 = vadd.f32 0.0, %v1921
        %v1923 = vpop.f32.mrf.mxu0
        %v1924 = vadd.f32 0.0, %v1923
        %1925 = vmatmul.bf16.gmra.mxu0 %v1344
        %v1926 = vpop.f32.mrf.mxu0
        %v1927 = vadd.f32 0.0, %v1926
        %v1928 = vpop.f32.mrf.mxu0
        %v1929 = vadd.f32 0.0, %v1928
        %1930 = vmatmul.bf16.gmra.mxu0 %v1347
        %v1931 = vpop.f32.mrf.mxu0
        %v1932 = vadd.f32 0.0, %v1931
        %v1933 = vpop.f32.mrf.mxu0
        %v1934 = vadd.f32 0.0, %v1933
        %1935 = vmatmul.bf16.gmra.mxu0 %v1350
        %v1936 = vpop.f32.mrf.mxu0
        %v1937 = vadd.f32 0.0, %v1936
        %v1938 = vpop.f32.mrf.mxu0
        %v1939 = vadd.f32 0.0, %v1938
        %1940 = vmatmul.bf16.gmra.mxu0 %v1353
        %v1941 = vpop.f32.mrf.mxu0
        %v1942 = vadd.f32 0.0, %v1941
        %v1943 = vpop.f32.mrf.mxu0
        %v1944 = vadd.f32 0.0, %v1943
        %1945 = vmatmul.bf16.gmra.mxu0 %v1356
        %v1946 = vpop.f32.mrf.mxu0
        %v1947 = vadd.f32 0.0, %v1946
        %v1948 = vpop.f32.mrf.mxu0
        %v1949 = vadd.f32 0.0, %v1948
        %1950 = vmatmul.bf16.gmra.mxu0 %v1359
        %v1951 = vpop.f32.mrf.mxu0
        %v1952 = vadd.f32 0.0, %v1951
        %v1953 = vpop.f32.mrf.mxu0
        %v1954 = vadd.f32 0.0, %v1953
        %1955 = vmatmul.bf16.gmra.mxu0 %v1362
        %v1956 = vpop.f32.mrf.mxu0
        %v1957 = vadd.f32 0.0, %v1956
        %v1958 = vpop.f32.mrf.mxu0
        %v1959 = vadd.f32 0.0, %v1958
        %1960 = vmatmul.bf16.gmra.mxu0 %v1365
        %v1961 = vpop.f32.mrf.mxu0
        %v1962 = vadd.f32 0.0, %v1961
        %v1963 = vpop.f32.mrf.mxu0
        %v1964 = vadd.f32 0.0, %v1963
        %1965 = vmatmul.bf16.gmra.mxu0 %v1368
        %v1966 = vpop.f32.mrf.mxu0
        %v1967 = vadd.f32 0.0, %v1966
        %v1968 = vpop.f32.mrf.mxu0
        %v1969 = vadd.f32 0.0, %v1968
        %1970 = vmatmul.bf16.gmra.mxu0 %v1371
        %v1971 = vpop.f32.mrf.mxu0
        %v1972 = vadd.f32 0.0, %v1971
        %v1973 = vpop.f32.mrf.mxu0
        %v1974 = vadd.f32 0.0, %v1973
        %1975 = vmatmul.bf16.gmra.mxu0 %v1374
        %v1976 = vpop.f32.mrf.mxu0
        %v1977 = vadd.f32 0.0, %v1976
        %v1978 = vpop.f32.mrf.mxu0
        %v1979 = vadd.f32 0.0, %v1978
        %1980 = vmatmul.bf16.gmra.mxu0 %v1377
        %v1981 = vpop.f32.mrf.mxu0
        %v1982 = vadd.f32 0.0, %v1981
        %v1983 = vpop.f32.mrf.mxu0
        %v1984 = vadd.f32 0.0, %v1983
        %1985 = vmatmul.bf16.gmra.mxu0 %v1380
        %v1986 = vpop.f32.mrf.mxu0
        %v1987 = vadd.f32 0.0, %v1986
        %v1988 = vpop.f32.mrf.mxu0
        %v1989 = vadd.f32 0.0, %v1988
        %1990 = vmatmul.bf16.gmra.mxu0 %v1383
        %v1991 = vpop.f32.mrf.mxu0
        %v1992 = vadd.f32 0.0, %v1991
        %v1993 = vpop.f32.mrf.mxu0
        %v1994 = vadd.f32 0.0, %v1993
        %1995 = vmatmul.bf16.gmra.mxu0 %v1386
        %v1996 = vpop.f32.mrf.mxu0
        %v1997 = vadd.f32 0.0, %v1996
        %v1998 = vpop.f32.mrf.mxu0
        %v1999 = vadd.f32 0.0, %v1998
        %2000 = vmatmul.bf16.gmra.mxu0 %v1389
        %v2001 = vpop.f32.mrf.mxu0
        %v2002 = vadd.f32 0.0, %v2001
        %v2003 = vpop.f32.mrf.mxu0
        %v2004 = vadd.f32 0.0, %v2003
        %2005 = vmatmul.bf16.gmra.mxu0 %v1392
        %v2006 = vpop.f32.mrf.mxu0
        %v2007 = vadd.f32 0.0, %v2006
        %v2008 = vpop.f32.mrf.mxu0
        %v2009 = vadd.f32 0.0, %v2008
        %2010 = vmatmul.bf16.gmra.mxu0 %v1395
        %v2011 = vpop.f32.mrf.mxu0
        %v2012 = vadd.f32 0.0, %v2011
        %v2013 = vpop.f32.mrf.mxu0
        %v2014 = vadd.f32 0.0, %v2013
        %2015 = vmatmul.bf16.gmra.mxu0 %v1398
        %v2016 = vpop.f32.mrf.mxu0
        %v2017 = vadd.f32 0.0, %v2016
        %v2018 = vpop.f32.mrf.mxu0
        %v2019 = vadd.f32 0.0, %v2018
        %2020 = vmatmul.bf16.gmra.mxu0 %v1401
        %v2021 = vpop.f32.mrf.mxu0
        %v2022 = vadd.f32 0.0, %v2021
        %v2023 = vpop.f32.mrf.mxu0
        %v2024 = vadd.f32 0.0, %v2023
        %2025 = vmatmul.bf16.gmra.mxu0 %v1404
        %v2026 = vpop.f32.mrf.mxu0
        %v2027 = vadd.f32 0.0, %v2026
        %v2028 = vpop.f32.mrf.mxu0
        %v2029 = vadd.f32 0.0, %v2028
        %2030 = vmatmul.bf16.gmra.mxu0 %v1407
        %v2031 = vpop.f32.mrf.mxu0
        %v2032 = vadd.f32 0.0, %v2031
        %v2033 = vpop.f32.mrf.mxu0
        %v2034 = vadd.f32 0.0, %v2033
        %2035 = vmatmul.bf16.gmra.mxu0 %v1410
        %v2036 = vpop.f32.mrf.mxu0
        %v2037 = vadd.f32 0.0, %v2036
        %v2038 = vpop.f32.mrf.mxu0
        %v2039 = vadd.f32 0.0, %v2038
        %2040 = vmatmul.bf16.gmra.mxu0 %v1413
        %v2041 = vpop.f32.mrf.mxu0
        %v2042 = vadd.f32 0.0, %v2041
        %v2043 = vpop.f32.mrf.mxu0
        %v2044 = vadd.f32 0.0, %v2043
        %2045 = vmatmul.bf16.gmra.mxu0 %v1416
        %v2046 = vpop.f32.mrf.mxu0
        %v2047 = vadd.f32 0.0, %v2046
        %v2048 = vpop.f32.mrf.mxu0
        %v2049 = vadd.f32 0.0, %v2048
        %2050 = vmatmul.bf16.gmra.mxu0 %v1419
        %v2051 = vpop.f32.mrf.mxu0
        %v2052 = vadd.f32 0.0, %v2051
        %v2053 = vpop.f32.mrf.mxu0
        %v2054 = vadd.f32 0.0, %v2053
        %2055 = vmatmul.bf16.gmra.mxu0 %v1422
        %v2056 = vpop.f32.mrf.mxu0
        %v2057 = vadd.f32 0.0, %v2056
        %v2058 = vpop.f32.mrf.mxu0
        %v2059 = vadd.f32 0.0, %v2058
        %2060 = vmatmul.bf16.gmra.mxu0 %v1425
        %v2061 = vpop.f32.mrf.mxu0
        %v2062 = vadd.f32 0.0, %v2061
        %v2063 = vpop.f32.mrf.mxu0
        %v2064 = vadd.f32 0.0, %v2063
        %2065 = vmatmul.bf16.gmra.mxu0 %v1428
        %v2066 = vpop.f32.mrf.mxu0
        %v2067 = vadd.f32 0.0, %v2066
        %v2068 = vpop.f32.mrf.mxu0
        %v2069 = vadd.f32 0.0, %v2068
        %2070 = vmatmul.bf16.gmra.mxu0 %v1431
        %v2071 = vpop.f32.mrf.mxu0
        %v2072 = vadd.f32 0.0, %v2071
        %v2073 = vpop.f32.mrf.mxu0
        %v2074 = vadd.f32 0.0, %v2073
        %2075 = vmatmul.bf16.gmra.mxu0 %v1434
        %v2076 = vpop.f32.mrf.mxu0
        %v2077 = vadd.f32 0.0, %v2076
        %v2078 = vpop.f32.mrf.mxu0
        %v2079 = vadd.f32 0.0, %v2078
        %2080 = vmatmul.bf16.gmra.mxu0 %v1437
        %v2081 = vpop.f32.mrf.mxu0
        %v2082 = vadd.f32 0.0, %v2081
        %v2083 = vpop.f32.mrf.mxu0
        %v2084 = vadd.f32 0.0, %v2083
        %2085 = vmatmul.bf16.gmra.mxu0 %v1440
        %v2086 = vpop.f32.mrf.mxu0
        %v2087 = vadd.f32 0.0, %v2086
        %v2088 = vpop.f32.mrf.mxu0
        %v2089 = vadd.f32 0.0, %v2088
        %2090 = vdwg.mxu0
        %v2091 = vmax.f32 %v1452, 0.0
        %v2092 = vmax.f32 %v1454, 0.0
        %v2093 = vmax.f32 %v1457, 0.0
        %v2094 = vmax.f32 %v1459, 0.0
        %v2095 = vmax.f32 %v1462, 0.0
        %v2096 = vmax.f32 %v1464, 0.0
        %v2097 = vmax.f32 %v1467, 0.0
        %v2098 = vmax.f32 %v1469, 0.0
        %v2099 = vmax.f32 %v1472, 0.0
        %v2100 = vmax.f32 %v1474, 0.0
        %v2101 = vmax.f32 %v1477, 0.0
        %v2102 = vmax.f32 %v1479, 0.0
        %v2103 = vmax.f32 %v1482, 0.0
        %v2104 = vmax.f32 %v1484, 0.0
        %v2105 = vmax.f32 %v1487, 0.0
        %v2106 = vmax.f32 %v1489, 0.0
        %v2107 = vmax.f32 %v1492, 0.0
        %v2108 = vmax.f32 %v1494, 0.0
        %v2109 = vmax.f32 %v1497, 0.0
        %v2110 = vmax.f32 %v1499, 0.0
        %v2111 = vmax.f32 %v1502, 0.0
        %v2112 = vmax.f32 %v1504, 0.0
        %v2113 = vmax.f32 %v1507, 0.0
        %v2114 = vmax.f32 %v1509, 0.0
        %v2115 = vmax.f32 %v1512, 0.0
        %v2116 = vmax.f32 %v1514, 0.0
        %v2117 = vmax.f32 %v1517, 0.0
        %v2118 = vmax.f32 %v1519, 0.0
        %v2119 = vmax.f32 %v1522, 0.0
        %v2120 = vmax.f32 %v1524, 0.0
        %v2121 = vmax.f32 %v1527, 0.0
        %v2122 = vmax.f32 %v1529, 0.0
        %v2123 = vmax.f32 %v1532, 0.0
        %v2124 = vmax.f32 %v1534, 0.0
        %v2125 = vmax.f32 %v1537, 0.0
        %v2126 = vmax.f32 %v1539, 0.0
        %v2127 = vmax.f32 %v1542, 0.0
        %v2128 = vmax.f32 %v1544, 0.0
        %v2129 = vmax.f32 %v1547, 0.0
        %v2130 = vmax.f32 %v1549, 0.0
        %v2131 = vmax.f32 %v1552, 0.0
        %v2132 = vmax.f32 %v1554, 0.0
        %v2133 = vmax.f32 %v1557, 0.0
        %v2134 = vmax.f32 %v1559, 0.0
        %v2135 = vmax.f32 %v1562, 0.0
        %v2136 = vmax.f32 %v1564, 0.0
        %v2137 = vmax.f32 %v1567, 0.0
        %v2138 = vmax.f32 %v1569, 0.0
        %v2139 = vmax.f32 %v1572, 0.0
        %v2140 = vmax.f32 %v1574, 0.0
        %v2141 = vmax.f32 %v1577, 0.0
        %v2142 = vmax.f32 %v1579, 0.0
        %v2143 = vmax.f32 %v1582, 0.0
        %v2144 = vmax.f32 %v1584, 0.0
        %v2145 = vmax.f32 %v1587, 0.0
        %v2146 = vmax.f32 %v1589, 0.0
        %v2147 = vmax.f32 %v1592, 0.0
        %v2148 = vmax.f32 %v1594, 0.0
        %v2149 = vmax.f32 %v1597, 0.0
        %v2150 = vmax.f32 %v1599, 0.0
        %v2151 = vmax.f32 %v1602, 0.0
        %v2152 = vmax.f32 %v1604, 0.0
        %v2153 = vmax.f32 %v1607, 0.0
        %v2154 = vmax.f32 %v1609, 0.0
        %v2155 = vmax.f32 %v1612, 0.0
        %v2156 = vmax.f32 %v1614, 0.0
        %v2157 = vmax.f32 %v1617, 0.0
        %v2158 = vmax.f32 %v1619, 0.0
        %v2159 = vmax.f32 %v1622, 0.0
        %v2160 = vmax.f32 %v1624, 0.0
        %v2161 = vmax.f32 %v1627, 0.0
        %v2162 = vmax.f32 %v1629, 0.0
        %v2163 = vmax.f32 %v1632, 0.0
        %v2164 = vmax.f32 %v1634, 0.0
        %v2165 = vmax.f32 %v1637, 0.0
        %v2166 = vmax.f32 %v1639, 0.0
        %v2167 = vmax.f32 %v1642, 0.0
        %v2168 = vmax.f32 %v1644, 0.0
        %v2169 = vmax.f32 %v1647, 0.0
        %v2170 = vmax.f32 %v1649, 0.0
        %v2171 = vmax.f32 %v1652, 0.0
        %v2172 = vmax.f32 %v1654, 0.0
        %v2173 = vmax.f32 %v1657, 0.0
        %v2174 = vmax.f32 %v1659, 0.0
        %v2175 = vmax.f32 %v1662, 0.0
        %v2176 = vmax.f32 %v1664, 0.0
        %v2177 = vmax.f32 %v1667, 0.0
        %v2178 = vmax.f32 %v1669, 0.0
        %v2179 = vmax.f32 %v1672, 0.0
        %v2180 = vmax.f32 %v1674, 0.0
        %v2181 = vmax.f32 %v1677, 0.0
        %v2182 = vmax.f32 %v1679, 0.0
        %v2183 = vmax.f32 %v1682, 0.0
        %v2184 = vmax.f32 %v1684, 0.0
        %v2185 = vmax.f32 %v1687, 0.0
        %v2186 = vmax.f32 %v1689, 0.0
        %v2187 = vmax.f32 %v1692, 0.0
        %v2188 = vmax.f32 %v1694, 0.0
        %v2189 = vmax.f32 %v1697, 0.0
        %v2190 = vmax.f32 %v1699, 0.0
        %v2191 = vmax.f32 %v1702, 0.0
        %v2192 = vmax.f32 %v1704, 0.0
        %v2193 = vmax.f32 %v1707, 0.0
        %v2194 = vmax.f32 %v1709, 0.0
        %v2195 = vmax.f32 %v1712, 0.0
        %v2196 = vmax.f32 %v1714, 0.0
        %v2197 = vmax.f32 %v1717, 0.0
        %v2198 = vmax.f32 %v1719, 0.0
        %v2199 = vmax.f32 %v1722, 0.0
        %v2200 = vmax.f32 %v1724, 0.0
        %v2201 = vmax.f32 %v1727, 0.0
        %v2202 = vmax.f32 %v1729, 0.0
        %v2203 = vmax.f32 %v1732, 0.0
        %v2204 = vmax.f32 %v1734, 0.0
        %v2205 = vmax.f32 %v1737, 0.0
        %v2206 = vmax.f32 %v1739, 0.0
        %v2207 = vmax.f32 %v1742, 0.0
        %v2208 = vmax.f32 %v1744, 0.0
        %v2209 = vmax.f32 %v1747, 0.0
        %v2210 = vmax.f32 %v1749, 0.0
        %v2211 = vmax.f32 %v1752, 0.0
        %v2212 = vmax.f32 %v1754, 0.0
        %v2213 = vmax.f32 %v1757, 0.0
        %v2214 = vmax.f32 %v1759, 0.0
        %v2215 = vmax.f32 %v1762, 0.0
        %v2216 = vmax.f32 %v1764, 0.0
        %v2217 = vmax.f32 %v1767, 0.0
        %v2218 = vmax.f32 %v1769, 0.0
        %v2219 = vmax.f32 %v1772, 0.0
        %v2220 = vmax.f32 %v1774, 0.0
        %v2221 = vmax.f32 %v1777, 0.0
        %v2222 = vmax.f32 %v1779, 0.0
        %v2223 = vmax.f32 %v1782, 0.0
        %v2224 = vmax.f32 %v1784, 0.0
        %v2225 = vmax.f32 %v1787, 0.0
        %v2226 = vmax.f32 %v1789, 0.0
        %v2227 = vmax.f32 %v1792, 0.0
        %v2228 = vmax.f32 %v1794, 0.0
        %v2229 = vmax.f32 %v1797, 0.0
        %v2230 = vmax.f32 %v1799, 0.0
        %v2231 = vmax.f32 %v1802, 0.0
        %v2232 = vmax.f32 %v1804, 0.0
        %v2233 = vmax.f32 %v1807, 0.0
        %v2234 = vmax.f32 %v1809, 0.0
        %v2235 = vmax.f32 %v1812, 0.0
        %v2236 = vmax.f32 %v1814, 0.0
        %v2237 = vmax.f32 %v1817, 0.0
        %v2238 = vmax.f32 %v1819, 0.0
        %v2239 = vmax.f32 %v1822, 0.0
        %v2240 = vmax.f32 %v1824, 0.0
        %v2241 = vmax.f32 %v1827, 0.0
        %v2242 = vmax.f32 %v1829, 0.0
        %v2243 = vmax.f32 %v1832, 0.0
        %v2244 = vmax.f32 %v1834, 0.0
        %v2245 = vmax.f32 %v1837, 0.0
        %v2246 = vmax.f32 %v1839, 0.0
        %v2247 = vmax.f32 %v1842, 0.0
        %v2248 = vmax.f32 %v1844, 0.0
        %v2249 = vmax.f32 %v1847, 0.0
        %v2250 = vmax.f32 %v1849, 0.0
        %v2251 = vmax.f32 %v1852, 0.0
        %v2252 = vmax.f32 %v1854, 0.0
        %v2253 = vmax.f32 %v1857, 0.0
        %v2254 = vmax.f32 %v1859, 0.0
        %v2255 = vmax.f32 %v1862, 0.0
        %v2256 = vmax.f32 %v1864, 0.0
        %v2257 = vmax.f32 %v1867, 0.0
        %v2258 = vmax.f32 %v1869, 0.0
        %v2259 = vmax.f32 %v1872, 0.0
        %v2260 = vmax.f32 %v1874, 0.0
        %v2261 = vmax.f32 %v1877, 0.0
        %v2262 = vmax.f32 %v1879, 0.0
        %v2263 = vmax.f32 %v1882, 0.0
        %v2264 = vmax.f32 %v1884, 0.0
        %v2265 = vmax.f32 %v1887, 0.0
        %v2266 = vmax.f32 %v1889, 0.0
        %v2267 = vmax.f32 %v1892, 0.0
        %v2268 = vmax.f32 %v1894, 0.0
        %v2269 = vmax.f32 %v1897, 0.0
        %v2270 = vmax.f32 %v1899, 0.0
        %v2271 = vmax.f32 %v1902, 0.0
        %v2272 = vmax.f32 %v1904, 0.0
        %v2273 = vmax.f32 %v1907, 0.0
        %v2274 = vmax.f32 %v1909, 0.0
        %v2275 = vmax.f32 %v1912, 0.0
        %v2276 = vmax.f32 %v1914, 0.0
        %v2277 = vmax.f32 %v1917, 0.0
        %v2278 = vmax.f32 %v1919, 0.0
        %v2279 = vmax.f32 %v1922, 0.0
        %v2280 = vmax.f32 %v1924, 0.0
        %v2281 = vmax.f32 %v1927, 0.0
        %v2282 = vmax.f32 %v1929, 0.0
        %v2283 = vmax.f32 %v1932, 0.0
        %v2284 = vmax.f32 %v1934, 0.0
        %v2285 = vmax.f32 %v1937, 0.0
        %v2286 = vmax.f32 %v1939, 0.0
        %v2287 = vmax.f32 %v1942, 0.0
        %v2288 = vmax.f32 %v1944, 0.0
        %v2289 = vmax.f32 %v1947, 0.0
        %v2290 = vmax.f32 %v1949, 0.0
        %v2291 = vmax.f32 %v1952, 0.0
        %v2292 = vmax.f32 %v1954, 0.0
        %v2293 = vmax.f32 %v1957, 0.0
        %v2294 = vmax.f32 %v1959, 0.0
        %v2295 = vmax.f32 %v1962, 0.0
        %v2296 = vmax.f32 %v1964, 0.0
        %v2297 = vmax.f32 %v1967, 0.0
        %v2298 = vmax.f32 %v1969, 0.0
        %v2299 = vmax.f32 %v1972, 0.0
        %v2300 = vmax.f32 %v1974, 0.0
        %v2301 = vmax.f32 %v1977, 0.0
        %v2302 = vmax.f32 %v1979, 0.0
        %v2303 = vmax.f32 %v1982, 0.0
        %v2304 = vmax.f32 %v1984, 0.0
        %v2305 = vmax.f32 %v1987, 0.0
        %v2306 = vmax.f32 %v1989, 0.0
        %v2307 = vmax.f32 %v1992, 0.0
        %v2308 = vmax.f32 %v1994, 0.0
        %v2309 = vmax.f32 %v1997, 0.0
        %v2310 = vmax.f32 %v1999, 0.0
        %v2311 = vmax.f32 %v2002, 0.0
        %v2312 = vmax.f32 %v2004, 0.0
        %v2313 = vmax.f32 %v2007, 0.0
        %v2314 = vmax.f32 %v2009, 0.0
        %v2315 = vmax.f32 %v2012, 0.0
        %v2316 = vmax.f32 %v2014, 0.0
        %v2317 = vmax.f32 %v2017, 0.0
        %v2318 = vmax.f32 %v2019, 0.0
        %v2319 = vmax.f32 %v2022, 0.0
        %v2320 = vmax.f32 %v2024, 0.0
        %v2321 = vmax.f32 %v2027, 0.0
        %v2322 = vmax.f32 %v2029, 0.0
        %v2323 = vmax.f32 %v2032, 0.0
        %v2324 = vmax.f32 %v2034, 0.0
        %v2325 = vmax.f32 %v2037, 0.0
        %v2326 = vmax.f32 %v2039, 0.0
        %v2327 = vmax.f32 %v2042, 0.0
        %v2328 = vmax.f32 %v2044, 0.0
        %v2329 = vmax.f32 %v2047, 0.0
        %v2330 = vmax.f32 %v2049, 0.0
        %v2331 = vmax.f32 %v2052, 0.0
        %v2332 = vmax.f32 %v2054, 0.0
        %v2333 = vmax.f32 %v2057, 0.0
        %v2334 = vmax.f32 %v2059, 0.0
        %v2335 = vmax.f32 %v2062, 0.0
        %v2336 = vmax.f32 %v2064, 0.0
        %v2337 = vmax.f32 %v2067, 0.0
        %v2338 = vmax.f32 %v2069, 0.0
        %v2339 = vmax.f32 %v2072, 0.0
        %v2340 = vmax.f32 %v2074, 0.0
        %v2341 = vmax.f32 %v2077, 0.0
        %v2342 = vmax.f32 %v2079, 0.0
        %v2343 = vmax.f32 %v2082, 0.0
        %v2344 = vmax.f32 %v2084, 0.0
        %v2345 = vmax.f32 %v2087, 0.0
        %v2346 = vmax.f32 %v2089, 0.0
        %v2347 = vadd.f32 %v2091, %v2092
        %v2348 = vadd.f32 %v2347, %v2093
        %v2349 = vadd.f32 %v2348, %v2094
        %v2350 = vadd.f32 %v2349, %v2095
        %v2351 = vadd.f32 %v2350, %v2096
        %v2352 = vadd.f32 %v2351, %v2097
        %v2353 = vadd.f32 %v2352, %v2098
        %v2354 = vadd.f32 %v2353, %v2099
        %v2355 = vadd.f32 %v2354, %v2100
        %v2356 = vadd.f32 %v2355, %v2101
        %v2357 = vadd.f32 %v2356, %v2102
        %v2358 = vadd.f32 %v2357, %v2103
        %v2359 = vadd.f32 %v2358, %v2104
        %v2360 = vadd.f32 %v2359, %v2105
        %v2361 = vadd.f32 %v2360, %v2106
        %v2362 = vadd.f32 %v2361, %v2107
        %v2363 = vadd.f32 %v2362, %v2108
        %v2364 = vadd.f32 %v2363, %v2109
        %v2365 = vadd.f32 %v2364, %v2110
        %v2366 = vadd.f32 %v2365, %v2111
        %v2367 = vadd.f32 %v2366, %v2112
        %v2368 = vadd.f32 %v2367, %v2113
        %v2369 = vadd.f32 %v2368, %v2114
        %v2370 = vadd.f32 %v2369, %v2115
        %v2371 = vadd.f32 %v2370, %v2116
        %v2372 = vadd.f32 %v2371, %v2117
        %v2373 = vadd.f32 %v2372, %v2118
        %v2374 = vadd.f32 %v2373, %v2119
        %v2375 = vadd.f32 %v2374, %v2120
        %v2376 = vadd.f32 %v2375, %v2121
        %v2377 = vadd.f32 %v2376, %v2122
        %v2378 = vrot.slane %v2377, 4
        %v2379 = vadd.f32 %v2377, %v2378
        %v2380 = vrot.slane %v2379, 2
        %v2381 = vadd.f32 %v2379, %v2380
        %v2382 = vrot.slane %v2381, 1
        %v2383 = vadd.f32 %v2381, %v2382
        %v2384 = vmul.f32 %v2383, 0.00390625
        %2385 = vst [vmem:[%s137] sm:$0x1] %v2384
        %v2386 = vadd.f32 %v2123, %v2124
        %v2387 = vadd.f32 %v2386, %v2125
        %v2388 = vadd.f32 %v2387, %v2126
        %v2389 = vadd.f32 %v2388, %v2127
        %v2390 = vadd.f32 %v2389, %v2128
        %v2391 = vadd.f32 %v2390, %v2129
        %v2392 = vadd.f32 %v2391, %v2130
        %v2393 = vadd.f32 %v2392, %v2131
        %v2394 = vadd.f32 %v2393, %v2132
        %v2395 = vadd.f32 %v2394, %v2133
        %v2396 = vadd.f32 %v2395, %v2134
        %v2397 = vadd.f32 %v2396, %v2135
        %v2398 = vadd.f32 %v2397, %v2136
        %v2399 = vadd.f32 %v2398, %v2137
        %v2400 = vadd.f32 %v2399, %v2138
        %v2401 = vadd.f32 %v2400, %v2139
        %v2402 = vadd.f32 %v2401, %v2140
        %v2403 = vadd.f32 %v2402, %v2141
        %v2404 = vadd.f32 %v2403, %v2142
        %v2405 = vadd.f32 %v2404, %v2143
        %v2406 = vadd.f32 %v2405, %v2144
        %v2407 = vadd.f32 %v2406, %v2145
        %v2408 = vadd.f32 %v2407, %v2146
        %v2409 = vadd.f32 %v2408, %v2147
        %v2410 = vadd.f32 %v2409, %v2148
        %v2411 = vadd.f32 %v2410, %v2149
        %v2412 = vadd.f32 %v2411, %v2150
        %v2413 = vadd.f32 %v2412, %v2151
        %v2414 = vadd.f32 %v2413, %v2152
        %v2415 = vadd.f32 %v2414, %v2153
        %v2416 = vadd.f32 %v2415, %v2154
        %v2417 = vrot.slane %v2416, 4
        %v2418 = vadd.f32 %v2416, %v2417
        %v2419 = vrot.slane %v2418, 2
        %v2420 = vadd.f32 %v2418, %v2419
        %v2421 = vrot.slane %v2420, 1
        %v2422 = vadd.f32 %v2420, %v2421
        %v2423 = vmul.f32 %v2422, 0.00390625
        %2424 = vst [vmem:[%s137 + $0x1] sm:$0x1] %v2423
        %v2425 = vadd.f32 %v2155, %v2156
        %v2426 = vadd.f32 %v2425, %v2157
        %v2427 = vadd.f32 %v2426, %v2158
        %v2428 = vadd.f32 %v2427, %v2159
        %v2429 = vadd.f32 %v2428, %v2160
        %v2430 = vadd.f32 %v2429, %v2161
        %v2431 = vadd.f32 %v2430, %v2162
        %v2432 = vadd.f32 %v2431, %v2163
        %v2433 = vadd.f32 %v2432, %v2164
        %v2434 = vadd.f32 %v2433, %v2165
        %v2435 = vadd.f32 %v2434, %v2166
        %v2436 = vadd.f32 %v2435, %v2167
        %v2437 = vadd.f32 %v2436, %v2168
        %v2438 = vadd.f32 %v2437, %v2169
        %v2439 = vadd.f32 %v2438, %v2170
        %v2440 = vadd.f32 %v2439, %v2171
        %v2441 = vadd.f32 %v2440, %v2172
        %v2442 = vadd.f32 %v2441, %v2173
        %v2443 = vadd.f32 %v2442, %v2174
        %v2444 = vadd.f32 %v2443, %v2175
        %v2445 = vadd.f32 %v2444, %v2176
        %v2446 = vadd.f32 %v2445, %v2177
        %v2447 = vadd.f32 %v2446, %v2178
        %v2448 = vadd.f32 %v2447, %v2179
        %v2449 = vadd.f32 %v2448, %v2180
        %v2450 = vadd.f32 %v2449, %v2181
        %v2451 = vadd.f32 %v2450, %v2182
        %v2452 = vadd.f32 %v2451, %v2183
        %v2453 = vadd.f32 %v2452, %v2184
        %v2454 = vadd.f32 %v2453, %v2185
        %v2455 = vadd.f32 %v2454, %v2186
        %v2456 = vrot.slane %v2455, 4
        %v2457 = vadd.f32 %v2455, %v2456
        %v2458 = vrot.slane %v2457, 2
        %v2459 = vadd.f32 %v2457, %v2458
        %v2460 = vrot.slane %v2459, 1
        %v2461 = vadd.f32 %v2459, %v2460
        %v2462 = vmul.f32 %v2461, 0.00390625
        %2463 = vst [vmem:[%s137 + $0x2] sm:$0x1] %v2462
        %v2464 = vadd.f32 %v2187, %v2188
        %v2465 = vadd.f32 %v2464, %v2189
        %v2466 = vadd.f32 %v2465, %v2190
        %v2467 = vadd.f32 %v2466, %v2191
        %v2468 = vadd.f32 %v2467, %v2192
        %v2469 = vadd.f32 %v2468, %v2193
        %v2470 = vadd.f32 %v2469, %v2194
        %v2471 = vadd.f32 %v2470, %v2195
        %v2472 = vadd.f32 %v2471, %v2196
        %v2473 = vadd.f32 %v2472, %v2197
        %v2474 = vadd.f32 %v2473, %v2198
        %v2475 = vadd.f32 %v2474, %v2199
        %v2476 = vadd.f32 %v2475, %v2200
        %v2477 = vadd.f32 %v2476, %v2201
        %v2478 = vadd.f32 %v2477, %v2202
        %v2479 = vadd.f32 %v2478, %v2203
        %v2480 = vadd.f32 %v2479, %v2204
        %v2481 = vadd.f32 %v2480, %v2205
        %v2482 = vadd.f32 %v2481, %v2206
        %v2483 = vadd.f32 %v2482, %v2207
        %v2484 = vadd.f32 %v2483, %v2208
        %v2485 = vadd.f32 %v2484, %v2209
        %v2486 = vadd.f32 %v2485, %v2210
        %v2487 = vadd.f32 %v2486, %v2211
        %v2488 = vadd.f32 %v2487, %v2212
        %v2489 = vadd.f32 %v2488, %v2213
        %v2490 = vadd.f32 %v2489, %v2214
        %v2491 = vadd.f32 %v2490, %v2215
        %v2492 = vadd.f32 %v2491, %v2216
        %v2493 = vadd.f32 %v2492, %v2217
        %v2494 = vadd.f32 %v2493, %v2218
        %v2495 = vrot.slane %v2494, 4
        %v2496 = vadd.f32 %v2494, %v2495
        %v2497 = vrot.slane %v2496, 2
        %v2498 = vadd.f32 %v2496, %v2497
        %v2499 = vrot.slane %v2498, 1
        %v2500 = vadd.f32 %v2498, %v2499
        %v2501 = vmul.f32 %v2500, 0.00390625
        %2502 = vst [vmem:[%s137 + $0x3] sm:$0x1] %v2501
        %v2503 = vadd.f32 %v2219, %v2220
        %v2504 = vadd.f32 %v2503, %v2221
        %v2505 = vadd.f32 %v2504, %v2222
        %v2506 = vadd.f32 %v2505, %v2223
        %v2507 = vadd.f32 %v2506, %v2224
        %v2508 = vadd.f32 %v2507, %v2225
        %v2509 = vadd.f32 %v2508, %v2226
        %v2510 = vadd.f32 %v2509, %v2227
        %v2511 = vadd.f32 %v2510, %v2228
        %v2512 = vadd.f32 %v2511, %v2229
        %v2513 = vadd.f32 %v2512, %v2230
        %v2514 = vadd.f32 %v2513, %v2231
        %v2515 = vadd.f32 %v2514, %v2232
        %v2516 = vadd.f32 %v2515, %v2233
        %v2517 = vadd.f32 %v2516, %v2234
        %v2518 = vadd.f32 %v2517, %v2235
        %v2519 = vadd.f32 %v2518, %v2236
        %v2520 = vadd.f32 %v2519, %v2237
        %v2521 = vadd.f32 %v2520, %v2238
        %v2522 = vadd.f32 %v2521, %v2239
        %v2523 = vadd.f32 %v2522, %v2240
        %v2524 = vadd.f32 %v2523, %v2241
        %v2525 = vadd.f32 %v2524, %v2242
        %v2526 = vadd.f32 %v2525, %v2243
        %v2527 = vadd.f32 %v2526, %v2244
        %v2528 = vadd.f32 %v2527, %v2245
        %v2529 = vadd.f32 %v2528, %v2246
        %v2530 = vadd.f32 %v2529, %v2247
        %v2531 = vadd.f32 %v2530, %v2248
        %v2532 = vadd.f32 %v2531, %v2249
        %v2533 = vadd.f32 %v2532, %v2250
        %v2534 = vrot.slane %v2533, 4
        %v2535 = vadd.f32 %v2533, %v2534
        %v2536 = vrot.slane %v2535, 2
        %v2537 = vadd.f32 %v2535, %v2536
        %v2538 = vrot.slane %v2537, 1
        %v2539 = vadd.f32 %v2537, %v2538
        %v2540 = vmul.f32 %v2539, 0.00390625
        %2541 = vst [vmem:[%s137 + $0x4] sm:$0x1] %v2540
        %v2542 = vadd.f32 %v2251, %v2252
        %v2543 = vadd.f32 %v2542, %v2253
        %v2544 = vadd.f32 %v2543, %v2254
        %v2545 = vadd.f32 %v2544, %v2255
        %v2546 = vadd.f32 %v2545, %v2256
        %v2547 = vadd.f32 %v2546, %v2257
        %v2548 = vadd.f32 %v2547, %v2258
        %v2549 = vadd.f32 %v2548, %v2259
        %v2550 = vadd.f32 %v2549, %v2260
        %v2551 = vadd.f32 %v2550, %v2261
        %v2552 = vadd.f32 %v2551, %v2262
        %v2553 = vadd.f32 %v2552, %v2263
        %v2554 = vadd.f32 %v2553, %v2264
        %v2555 = vadd.f32 %v2554, %v2265
        %v2556 = vadd.f32 %v2555, %v2266
        %v2557 = vadd.f32 %v2556, %v2267
        %v2558 = vadd.f32 %v2557, %v2268
        %v2559 = vadd.f32 %v2558, %v2269
        %v2560 = vadd.f32 %v2559, %v2270
        %v2561 = vadd.f32 %v2560, %v2271
        %v2562 = vadd.f32 %v2561, %v2272
        %v2563 = vadd.f32 %v2562, %v2273
        %v2564 = vadd.f32 %v2563, %v2274
        %v2565 = vadd.f32 %v2564, %v2275
        %v2566 = vadd.f32 %v2565, %v2276
        %v2567 = vadd.f32 %v2566, %v2277
        %v2568 = vadd.f32 %v2567, %v2278
        %v2569 = vadd.f32 %v2568, %v2279
        %v2570 = vadd.f32 %v2569, %v2280
        %v2571 = vadd.f32 %v2570, %v2281
        %v2572 = vadd.f32 %v2571, %v2282
        %v2573 = vrot.slane %v2572, 4
        %v2574 = vadd.f32 %v2572, %v2573
        %v2575 = vrot.slane %v2574, 2
        %v2576 = vadd.f32 %v2574, %v2575
        %v2577 = vrot.slane %v2576, 1
        %v2578 = vadd.f32 %v2576, %v2577
        %v2579 = vmul.f32 %v2578, 0.00390625
        %2580 = vst [vmem:[%s137 + $0x5] sm:$0x1] %v2579
        %v2581 = vadd.f32 %v2283, %v2284
        %v2582 = vadd.f32 %v2581, %v2285
        %v2583 = vadd.f32 %v2582, %v2286
        %v2584 = vadd.f32 %v2583, %v2287
        %v2585 = vadd.f32 %v2584, %v2288
        %v2586 = vadd.f32 %v2585, %v2289
        %v2587 = vadd.f32 %v2586, %v2290
        %v2588 = vadd.f32 %v2587, %v2291
        %v2589 = vadd.f32 %v2588, %v2292
        %v2590 = vadd.f32 %v2589, %v2293
        %v2591 = vadd.f32 %v2590, %v2294
        %v2592 = vadd.f32 %v2591, %v2295
        %v2593 = vadd.f32 %v2592, %v2296
        %v2594 = vadd.f32 %v2593, %v2297
        %v2595 = vadd.f32 %v2594, %v2298
        %v2596 = vadd.f32 %v2595, %v2299
        %v2597 = vadd.f32 %v2596, %v2300
        %v2598 = vadd.f32 %v2597, %v2301
        %v2599 = vadd.f32 %v2598, %v2302
        %v2600 = vadd.f32 %v2599, %v2303
        %v2601 = vadd.f32 %v2600, %v2304
        %v2602 = vadd.f32 %v2601, %v2305
        %v2603 = vadd.f32 %v2602, %v2306
        %v2604 = vadd.f32 %v2603, %v2307
        %v2605 = vadd.f32 %v2604, %v2308
        %v2606 = vadd.f32 %v2605, %v2309
        %v2607 = vadd.f32 %v2606, %v2310
        %v2608 = vadd.f32 %v2607, %v2311
        %v2609 = vadd.f32 %v2608, %v2312
        %v2610 = vadd.f32 %v2609, %v2313
        %v2611 = vadd.f32 %v2610, %v2314
        %v2612 = vrot.slane %v2611, 4
        %v2613 = vadd.f32 %v2611, %v2612
        %v2614 = vrot.slane %v2613, 2
        %v2615 = vadd.f32 %v2613, %v2614
        %v2616 = vrot.slane %v2615, 1
        %v2617 = vadd.f32 %v2615, %v2616
        %v2618 = vmul.f32 %v2617, 0.00390625
        %2619 = vst [vmem:[%s137 + $0x6] sm:$0x1] %v2618
        %v2620 = vadd.f32 %v2315, %v2316
        %v2621 = vadd.f32 %v2620, %v2317
        %v2622 = vadd.f32 %v2621, %v2318
        %v2623 = vadd.f32 %v2622, %v2319
        %v2624 = vadd.f32 %v2623, %v2320
        %v2625 = vadd.f32 %v2624, %v2321
        %v2626 = vadd.f32 %v2625, %v2322
        %v2627 = vadd.f32 %v2626, %v2323
        %v2628 = vadd.f32 %v2627, %v2324
        %v2629 = vadd.f32 %v2628, %v2325
        %v2630 = vadd.f32 %v2629, %v2326
        %v2631 = vadd.f32 %v2630, %v2327
        %v2632 = vadd.f32 %v2631, %v2328
        %v2633 = vadd.f32 %v2632, %v2329
        %v2634 = vadd.f32 %v2633, %v2330
        %v2635 = vadd.f32 %v2634, %v2331
        %v2636 = vadd.f32 %v2635, %v2332
        %v2637 = vadd.f32 %v2636, %v2333
        %v2638 = vadd.f32 %v2637, %v2334
        %v2639 = vadd.f32 %v2638, %v2335
        %v2640 = vadd.f32 %v2639, %v2336
        %v2641 = vadd.f32 %v2640, %v2337
        %v2642 = vadd.f32 %v2641, %v2338
        %v2643 = vadd.f32 %v2642, %v2339
        %v2644 = vadd.f32 %v2643, %v2340
        %v2645 = vadd.f32 %v2644, %v2341
        %v2646 = vadd.f32 %v2645, %v2342
        %v2647 = vadd.f32 %v2646, %v2343
        %v2648 = vadd.f32 %v2647, %v2344
        %v2649 = vadd.f32 %v2648, %v2345
        %v2650 = vadd.f32 %v2649, %v2346
        %v2651 = vrot.slane %v2650, 4
        %v2652 = vadd.f32 %v2650, %v2651
        %v2653 = vrot.slane %v2652, 2
        %v2654 = vadd.f32 %v2652, %v2653
        %v2655 = vrot.slane %v2654, 1
        %v2656 = vadd.f32 %v2654, %v2655
        %v2657 = vmul.f32 %v2656, 0.00390625
        %2658 = vst [vmem:[%s137 + $0x7] sm:$0x1] %v2657
        %s2659 = sand.u32 %s71, 1
        %s2660 = scalar_lea.sflag [#allocation3], %s2659
        %s2661 = sand.u32 %s71, 1
        %s2662 = smul.addr %s2661, 8
        %s2663 = scalar_lea.vmem [#allocation2], %s2662
        // Predicated region
        $region29: #{tpu_custom_call.1} parent=27 // pred_check
          %p2664 = pneg %p81
        $region30: #{tpu_custom_call.1} parent=27 // pred_check_branch
          %2666 = sbr.rel (%p2664) target = $region32
        $region31: #{tpu_custom_call.1} parent=27 // pred_region
          %2668 = vsyncadd %s2660, 0
          %s2669 = smul.addr %s16, 8
          %s2670 = scalar_lea.hbm %s2, %s2669
          %s2672 = sshll.u32 %s2663, 4
          %s2673 = int_to_ptr.vmem [resolvable:$true] %s2672
          %s2674 = sshll.u32 %s2670, 4
          %s2675 = int_to_ptr.hbm [resolvable:$true] %s2674
          %2677 = dma.vmem_to_hbm [thread:$0]  %s2673, 128, %s2675, %s2660
        $region32: #{tpu_custom_call.1} parent=27 // pred_fallthru
          _
      $region28: #{tpu_custom_call.1} parent=5 // pred_fallthru
        _
      %p2678 = scmp.le.s32.totalorder 2, %s11
      // Predicated region
      $region33: #{tpu_custom_call.1} parent=5 // pred_check
        %p2679 = pneg %p2678
      $region34: #{tpu_custom_call.1} parent=5 // pred_check_branch
        %2681 = sbr.rel (%p2679) target = $region36
      $region35: #{tpu_custom_call.1} parent=5 // pred_region
        %s2682 = ssub.s32 %s11, 2
        // Predicated region
        $region37: #{tpu_custom_call.1} parent=35 // pred_check
          %p2683 = pneg %p87
        $region38: #{tpu_custom_call.1} parent=35 // pred_check_branch
          %2685 = sbr.rel (%p2683) target = $region40
        $region39: #{tpu_custom_call.1} parent=35 // pred_region
          %s2686 = sand.u32 %s72, 1
          %s2687 = scalar_lea.sflag [#allocation3], %s2686
          %s2688 = sand.u32 %s72, 1
          %s2689 = smul.addr %s2688, 8
          %s2690 = scalar_lea.vmem [#allocation2], %s2689
          %2692 = dma.done %s2687, 128
        $region40: #{tpu_custom_call.1} parent=35 // pred_fallthru
          _
      $region36: #{tpu_custom_call.1} parent=5 // pred_fallthru
        _
    $region6: #{tpu_custom_call.1} parent=1 // loop_footer
      %s15 = sadd.s32 1, %s11
    $region7: #{tpu_custom_call.1} parent=1 // loop_footer_branch
      %10 = sbr.rel target = $region3
    $region8: #{tpu_custom_call.1} parent=1 // loop_exit
      _
    %2693 = vsyncpa [#allocation3], 1
    %s2694 = scalar_lea.sflag [#allocation3], 1
    %2695 = vsyncpa %s2694, 1

</llo_original>
